<compile_context>
chip_gen: v6e
topology: v6e:2x2x1
jax: 0.10.0
libtpu: 0.0.40
codegen_flags: <defaults>
</compile_context>

<pallas_src>
import jax
import jax.numpy as jnp
from jax.experimental import pallas as pl
from jax.experimental.pallas import tpu as pltpu

LANE = 128
SUB = 8
MAX_TILE_ROWS = 512     # sized for v7x (64 MiB physical / 32 MiB scoped VMEM)

# parameter packing order for the SMEM scalar vector (all float32)
(P_VL, P_VH, P_VT, P_GL, P_GT, P_VB, P_VR, P_TREF,
 P_DT_C, P_DT_TAUHM, P_DT_TAUHP, P_KNMDA,
 P_GA, P_VREVA, P_GN, P_VREVN, P_GG, P_VREVG, N_PARAMS) = range(19)


def neuron_fused_kernel(params_ref, times_ref,
                        v0_ref, h0_ref, ls0_ref,
                        iext_ref, fA_ref, fN_ref, fG_ref,
                        spike_ref, vthis_ref, isyn_ref,
                        vfin_ref, hfin_ref, lsfin_ref,
                        v_sc, h_sc, ls_sc):
    t = pl.program_id(1)
    n_steps = pl.num_programs(1)

    # initialize carried state for this neuron tile at the first time step
    @pl.when(t == 0)
    def _():
        v_sc[...] = v0_ref[...]
        h_sc[...] = h0_ref[...]
        ls_sc[...] = ls0_ref[...]

    # scalars (SMEM); ratios precomputed on host to avoid per-element divides
    v_L = params_ref[P_VL]
    v_h = params_ref[P_VH]
    v_T = params_ref[P_VT]
    g_L = params_ref[P_GL]
    g_T = params_ref[P_GT]
    v_b = params_ref[P_VB]
    v_r = params_ref[P_VR]
    T_refr = params_ref[P_TREF]
    dt_over_C = params_ref[P_DT_C]
    dt_over_tauhm = params_ref[P_DT_TAUHM]
    dt_over_tauhp = params_ref[P_DT_TAUHP]
    k_nmda = params_ref[P_KNMDA]
    gA, vrevA = params_ref[P_GA], params_ref[P_VREVA]
    gN, vrevN = params_ref[P_GN], params_ref[P_VREVN]
    gG, vrevG = params_ref[P_GG], params_ref[P_VREVG]

    Time = times_ref[t]

    v = v_sc[...]
    h = h_sc[...]
    ls = ls_sc[...]

    not_sat = Time > (ls + T_refr)

    # synaptic currents: one AMPA + one NMDA + one GABA synapse.
    # NMDA gate: exp on the EUP, approx reciprocal also on the EUP
    # (~2^-12 relative error — documented deviation from the exact divide).
    nmda_gate = pl.reciprocal(1.0 + jnp.exp(-k_nmda * v), approx=True)
    I_syn = (gA * (v - vrevA) * fA_ref[...]
             + gN * (v - vrevN) * fN_ref[...] * nmda_gate
             + gG * (v - vrevG) * fG_ref[...])
    I_syn = jnp.where(not_sat, I_syn, 0.0)

    # one mask reused for the T-current gate and the Heaviside step (CSE)
    m = v >= v_h
    dh = jnp.where(m, -h * dt_over_tauhm, (1.0 - h) * dt_over_tauhp)

    leak = g_L * (v - v_L)
    gT_term = jnp.where(m, g_T * h * (v - v_T), 0.0)
    dv1 = (-leak - gT_term - I_syn + iext_ref[...]) * dt_over_C
    dv2 = -leak * dt_over_C
    dv = jnp.where(not_sat, dv1, dv2)

    h_new = h + dh
    v_upd = v + dv

    fired = v_upd >= v_b
    spike = fired.astype(jnp.float32)

    # per-step records
    spike_ref[...] = spike
    vthis_ref[...] = jnp.where(fired, v_b, v_upd)
    isyn_ref[...] = I_syn

    # carried state update (stays in VMEM across the time axis)
    v_sc[...] = jnp.where(fired, v_r, v_upd)
    h_sc[...] = h_new
    ls_sc[...] = jnp.where(fired, Time, ls)

    # write the final state back once per neuron tile
    @pl.when(t == n_steps - 1)
    def _():
        vfin_ref[...] = v_sc[...]
        hfin_ref[...] = h_sc[...]
        lsfin_ref[...] = ls_sc[...]


def neuron_run(params, times, v0, h0, ls0, I_ext, fA, fN, fG):
    """Fused multi-step NeuronGroup.forward.

    params: (N_PARAMS,) f32; times: (T,) f32; v0/h0/ls0: (R, 128) f32;
    I_ext/fA/fN/fG: (T, R, 128) f32.
    Returns per-step records (spike, v_this, I_syn) of shape (T, R, 128) and the
    final (v, h, last_spike) state of shape (R, 128).
    """
    T = times.shape[0]
    R, L = v0.shape
    assert L == LANE and R % SUB == 0
    for a in (I_ext, fA, fN, fG):
        assert a.shape == (T, R, LANE)

    tile_rows = R if R <= MAX_TILE_ROWS else MAX_TILE_ROWS
    assert R % tile_rows == 0
    ntiles = R // tile_rows

    smem_spec = pl.BlockSpec(memory_space=pltpu.MemorySpace.SMEM)
    state_spec = pl.BlockSpec((tile_rows, LANE), lambda n, t: (n, 0))
    step_spec = pl.BlockSpec((None, tile_rows, LANE), lambda n, t: (t, n, 0))

    rec = jax.ShapeDtypeStruct((T, R, LANE), jnp.float32)
    st = jax.ShapeDtypeStruct((R, LANE), jnp.float32)

    return pl.pallas_call(
        neuron_fused_kernel,
        out_shape=(rec, rec, rec, st, st, st),
        grid_spec=pltpu.PrefetchScalarGridSpec(
            num_scalar_prefetch=0,
            grid=(ntiles, T),
            in_specs=[smem_spec, smem_spec,
                      state_spec, state_spec, state_spec,
                      step_spec, step_spec, step_spec, step_spec],
            out_specs=[step_spec, step_spec, step_spec,
                       state_spec, state_spec, state_spec],
            scratch_shapes=[pltpu.VMEM((tile_rows, LANE), jnp.float32)
                            for _ in range(3)],
        ),
        compiler_params=pltpu.CompilerParams(
            dimension_semantics=("parallel", "arbitrary")),
    )(params, times, v0, h0, ls0, I_ext, fA, fN, fG)


# ---------------------------------------------------------------------------
# JAX-side NeuronGroup mirroring the torch module (state kept in host wrapper)
# ---------------------------------------------------------------------------
class NeuronGroup:
    def __init__(self, dt, C=0.5, v_L=-70., v_h=-60., v_T=120., g_L=0.025,
                 g_T=0.06, v_b=-50., v_r=-55., tau_hm=20., tau_hp=100.,
                 num=SUB * LANE, T_ref=2.,
                 syn_AMPA=(0.0, 0.0), syn_NMDA=(0.0, 0.0), syn_GABA=(0.0, 0.0)):
        assert num % (SUB * LANE) == 0, "num must be a multiple of 8*128"
        self.num = num
        self.dt = float(dt)
        self.v_b = float(v_b)
        self.shape2d = (num // LANE, LANE)
        params = [0.0] * N_PARAMS
        params[P_VL] = v_L
        params[P_VH] = v_h
        params[P_VT] = v_T
        params[P_GL] = g_L
        params[P_GT] = g_T
        params[P_VB] = v_b
        params[P_VR] = v_r
        params[P_TREF] = T_ref
        # host-precomputed scalar ratios: no per-element divides in the kernel
        params[P_DT_C] = float(dt) / C
        params[P_DT_TAUHM] = float(dt) / tau_hm
        params[P_DT_TAUHP] = float(dt) / tau_hp
        params[P_KNMDA] = 0.062 / 3.57
        params[P_GA], params[P_VREVA] = syn_AMPA
        params[P_GN], params[P_VREVN] = syn_NMDA
        params[P_GG], params[P_VREVG] = syn_GABA
        self.params = jnp.asarray(params, dtype=jnp.float32)
        # initial state: v = v_L, h = 1, last_spike = 0
        self.v = jnp.full(self.shape2d, v_L, dtype=jnp.float32)
        self.h = jnp.ones(self.shape2d, dtype=jnp.float32)
        self.last_spike = jnp.zeros(self.shape2d, dtype=jnp.float32)
        self.spike_trains = []  # host-side record, filled once per fused run

    def run(self, times, I_ext, fA, fN, fG):
        """Advance the group over all `times` (one torch-forward per entry) in a
        single fused kernel; per-step semantics match the original forward."""
        spike, v_this, I_syn, v, h, ls = neuron_run(
            self.params, times, self.v, self.h, self.last_spike,
            I_ext, fA, fN, fG)
        self.v, self.h, self.last_spike = v, h, ls
        T = times.shape[0]
        spike = spike.reshape(T, self.num)
        self.spike_trains.extend(list(spike))   # once per run, not per dt step
        return spike, v_this.reshape(T, self.num), I_syn.reshape(T, self.num)


# ---------------------------------------------------------------------------
# Pure-JAX reference (line-by-line port of the torch forward) for verification
# ---------------------------------------------------------------------------
def reference_run(cfg, times, v, h, ls, I_ext, fA, fN, fG):
    def step(carry, xs):
        v, h, ls = carry
        Time, iext, fa, fn, fg = xs
        not_sat = Time > ls + cfg['T_ref']
        I_syn = cfg['gA'] * (v - cfg['vrevA']) * fa
        I_syn = I_syn + cfg['gN'] * (v - cfg['vrevN']) * fn / (1.0 + jnp.exp(-0.062 * v / 3.57))
        I_syn = I_syn + cfg['gG'] * (v - cfg['vrevG']) * fg
        I_syn = jnp.where(not_sat, I_syn, 0.0)
        T_open = v >= cfg['v_h']
        dh = jnp.where(T_open, -h / cfg['tau_hm'] * cfg['dt'],
                       (1.0 - h) / cfg['tau_hp'] * cfg['dt'])
        Hs = jnp.where((v - cfg['v_h']) >= 0.0, 1.0, 0.0)
        dv1 = (-cfg['g_L'] * (v - cfg['v_L']) - cfg['g_T'] * h * Hs * (v - cfg['v_T'])
               - I_syn + iext) / cfg['C'] * cfg['dt']
        dv2 = -cfg['g_L'] * (v - cfg['v_L']) / cfg['C'] * cfg['dt']
        dv = jnp.where(not_sat, dv1, dv2)
        h = h + dh
        v = v + dv
        spike = (v >= cfg['v_b']).astype(jnp.float32)
        fired = spike > 0
        v_this = jnp.where(fired, cfg['v_b'], v)
        v = jnp.where(fired, cfg['v_r'], v)
        ls = jnp.where(fired, Time, ls)
        return (v, h, ls), (spike, v_this, I_syn)

    (v, h, ls), (spike, v_this, I_syn) = jax.lax.scan(
        step, (v, h, ls), (times, I_ext, fA, fN, fG))
    return spike, v_this, I_syn, v, h, ls


if __name__ == "__main__":
    dt = 0.1
    t_refractory = 2.0
    num = 2048                      # small stand-in for num_scale = 2500 (multiple of 8*128)
    R = num // LANE
    key = jax.random.PRNGKey(0)

    synA, synN, synG = (0.02, 0.0), (0.01, 0.0), (0.05, -80.0)
    cfg = dict(dt=dt, C=0.5, v_L=-70., v_h=-60., v_T=120., g_L=0.025, g_T=0.06,
               v_b=-50., v_r=-55., tau_hm=20., tau_hp=100., T_ref=t_refractory,
               gA=synA[0], vrevA=synA[1], gN=synN[0], vrevN=synN[1],
               gG=synG[0], vrevG=synG[1])

    # ------------------------------------------------------------------
    # Test A: full synaptic math with random time-varying gating / drive
    # (sub-threshold regime).  Exercises the EUP approx-reciprocal path;
    # tolerances cover its ~2^-12 relative error accumulated over the run.
    # ------------------------------------------------------------------
    stepsA = 40
    kA, kN, kG, kI = jax.random.split(key, 4)
    fA = jax.random.uniform(kA, (stepsA, R, LANE), dtype=jnp.float32)
    fN = jax.random.uniform(kN, (stepsA, R, LANE), dtype=jnp.float32)
    fG = jax.random.uniform(kG, (stepsA, R, LANE), dtype=jnp.float32)
    I_ext = 0.3 * jax.random.uniform(kI, (stepsA, R, LANE), dtype=jnp.float32)
    timesA = jnp.arange(1, stepsA + 1, dtype=jnp.float32) * jnp.float32(dt)

    grpA = NeuronGroup(dt=dt, g_T=0.06, num=num, T_ref=t_refractory,
                       syn_AMPA=synA, syn_NMDA=synN, syn_GABA=synG)
    v0, h0, ls0 = grpA.v, grpA.h, grpA.last_spike
    spk, vth, isy = grpA.run(timesA, I_ext, fA, fN, fG)
    jax.block_until_ready((spk, vth, isy, grpA.v))

    rs, rvt, risy, rv, rh, rls = reference_run(cfg, timesA, v0, h0, ls0,
                                               I_ext, fA, fN, fG)
    flatA = (stepsA, num)
    assert jnp.allclose(spk, rs.reshape(flatA), atol=1e-6)
    assert jnp.allclose(vth, rvt.reshape(flatA), atol=5e-3)
    assert jnp.allclose(isy, risy.reshape(flatA), atol=2e-3)
    assert jnp.allclose(grpA.v, rv, atol=5e-3)
    assert jnp.allclose(grpA.h, rh, atol=1e-5)
    assert jnp.allclose(grpA.last_spike, rls, atol=1e-5)

    # ------------------------------------------------------------------
    # Test B: spiking / reset / refractory logic with zero synaptic gating
    # (the approx-reciprocal term is exactly zero) and strong constant drive:
    # threshold crossings are decisive, so the comparison is tight.
    # ------------------------------------------------------------------
    stepsB = 60
    timesB = jnp.arange(1, stepsB + 1, dtype=jnp.float32) * jnp.float32(dt)
    zero = jnp.zeros((stepsB, R, LANE), dtype=jnp.float32)
    I_drive = jnp.full((stepsB, R, LANE), 20.0, dtype=jnp.float32)

    grpB = NeuronGroup(dt=dt, g_T=0.06, num=num, T_ref=t_refractory,
                       syn_AMPA=synA, syn_NMDA=synN, syn_GABA=synG)
    v0b, h0b, ls0b = grpB.v, grpB.h, grpB.last_spike
    spkB, vthB, isyB = grpB.run(timesB, I_drive, zero, zero, zero)
    jax.block_until_ready((spkB, vthB, isyB, grpB.v))

    rsB, rvtB, risyB, rvB, rhB, rlsB = reference_run(cfg, timesB, v0b, h0b, ls0b,
                                                     I_drive, zero, zero, zero)
    flatB = (stepsB, num)
    assert jnp.array_equal(spkB, rsB.reshape(flatB))
    assert float(spkB.sum()) > 0.0            # spiking path was actually exercised
    assert jnp.allclose(vthB, rvtB.reshape(flatB), atol=1e-3)
    assert jnp.allclose(isyB, risyB.reshape(flatB), atol=1e-6)
    assert jnp.allclose(grpB.v, rvB, atol=1e-3)
    assert jnp.allclose(grpB.h, rhB, atol=1e-5)
    assert jnp.allclose(grpB.last_spike, rlsB, atol=1e-5)

    print("KERNEL_OK")
</pallas_src>

<mosaic_0001>
module attributes {stable_mosaic.version = 11 : i64} {
  func.func @neuron_fused_kernel(%arg0: i32, %arg1: i32, %arg2: memref<18xf32, #tpu.memory_space<smem>>, %arg3: memref<40xf32, #tpu.memory_space<smem>>, %arg4: memref<16x128xf32, #tpu.memory_space<vmem>>, %arg5: memref<16x128xf32, #tpu.memory_space<vmem>>, %arg6: memref<16x128xf32, #tpu.memory_space<vmem>>, %arg7: memref<1x16x128xf32, #tpu.memory_space<vmem>>, %arg8: memref<1x16x128xf32, #tpu.memory_space<vmem>>, %arg9: memref<1x16x128xf32, #tpu.memory_space<vmem>>, %arg10: memref<1x16x128xf32, #tpu.memory_space<vmem>>, %arg11: memref<1x16x128xf32, #tpu.memory_space<vmem>>, %arg12: memref<1x16x128xf32, #tpu.memory_space<vmem>>, %arg13: memref<1x16x128xf32, #tpu.memory_space<vmem>>, %arg14: memref<16x128xf32, #tpu.memory_space<vmem>>, %arg15: memref<16x128xf32, #tpu.memory_space<vmem>>, %arg16: memref<16x128xf32, #tpu.memory_space<vmem>>, %arg17: memref<16x128xf32, #tpu.memory_space<vmem>>, %arg18: memref<16x128xf32, #tpu.memory_space<vmem>>, %arg19: memref<16x128xf32, #tpu.memory_space<vmem>>) attributes {dimension_semantics = [#tpu.dimension_semantics<parallel>, #tpu.dimension_semantics<arbitrary>], iteration_bounds = array<i64: 1, 40>, scalar_prefetch = 0 : i64, scratch_operands = 3 : i64, tpu.core_type = #tpu.core_type<tc>, window_params = [{transform_indices = @transform_0, window_bounds = array<i64: 18>}, {transform_indices = @transform_1, window_bounds = array<i64: 40>}, {transform_indices = @transform_2, window_bounds = array<i64: 16, 128>}, {transform_indices = @transform_3, window_bounds = array<i64: 16, 128>}, {transform_indices = @transform_4, window_bounds = array<i64: 16, 128>}, {transform_indices = @transform_5, window_bounds = array<i64: 1, 16, 128>}, {transform_indices = @transform_6, window_bounds = array<i64: 1, 16, 128>}, {transform_indices = @transform_7, window_bounds = array<i64: 1, 16, 128>}, {transform_indices = @transform_8, window_bounds = array<i64: 1, 16, 128>}, {transform_indices = @transform_9, window_bounds = array<i64: 1, 16, 128>}, {transform_indices = @transform_10, window_bounds = array<i64: 1, 16, 128>}, {transform_indices = @transform_11, window_bounds = array<i64: 1, 16, 128>}, {transform_indices = @transform_12, window_bounds = array<i64: 16, 128>}, {transform_indices = @transform_13, window_bounds = array<i64: 16, 128>}, {transform_indices = @transform_14, window_bounds = array<i64: 16, 128>}]} {
    %c0_i32 = arith.constant 0 : i32
    %0 = arith.cmpi eq, %arg1, %c0_i32 : i32
    %1 = arith.extui %0 : i1 to i32
    %c0_i32_0 = arith.constant 0 : i32
    %2 = arith.cmpi ne, %1, %c0_i32_0 : i32
    scf.if %2 {
      %c0_42 = arith.constant 0 : index
      %c0_43 = arith.constant 0 : index
      %126 = vector.load %arg4[%c0_42, %c0_43] : memref<16x128xf32, #tpu.memory_space<vmem>>, vector<16x128xf32>
      %c0_44 = arith.constant 0 : index
      %c0_45 = arith.constant 0 : index
      %127 = vector.load %arg17[%c0_44, %c0_45] : memref<16x128xf32, #tpu.memory_space<vmem>>, vector<16x128xf32>
      tpu.vector_store %arg17[%c0_44, %c0_45], %126 {strides = array<i32>} : memref<16x128xf32, #tpu.memory_space<vmem>>, vector<16x128xf32>,
      %c0_46 = arith.constant 0 : index
      %c0_47 = arith.constant 0 : index
      %128 = vector.load %arg5[%c0_46, %c0_47] : memref<16x128xf32, #tpu.memory_space<vmem>>, vector<16x128xf32>
      %c0_48 = arith.constant 0 : index
      %c0_49 = arith.constant 0 : index
      %129 = vector.load %arg18[%c0_48, %c0_49] : memref<16x128xf32, #tpu.memory_space<vmem>>, vector<16x128xf32>
      tpu.vector_store %arg18[%c0_48, %c0_49], %128 {strides = array<i32>} : memref<16x128xf32, #tpu.memory_space<vmem>>, vector<16x128xf32>,
      %c0_50 = arith.constant 0 : index
      %c0_51 = arith.constant 0 : index
      %130 = vector.load %arg6[%c0_50, %c0_51] : memref<16x128xf32, #tpu.memory_space<vmem>>, vector<16x128xf32>
      %c0_52 = arith.constant 0 : index
      %c0_53 = arith.constant 0 : index
      %131 = vector.load %arg19[%c0_52, %c0_53] : memref<16x128xf32, #tpu.memory_space<vmem>>, vector<16x128xf32>
      tpu.vector_store %arg19[%c0_52, %c0_53], %130 {strides = array<i32>} : memref<16x128xf32, #tpu.memory_space<vmem>>, vector<16x128xf32>,
    } else {
    }
    %c0 = arith.constant 0 : index
    %3 = memref.load %arg2[%c0] : memref<18xf32, #tpu.memory_space<smem>>
    %c1 = arith.constant 1 : index
    %4 = memref.load %arg2[%c1] : memref<18xf32, #tpu.memory_space<smem>>
    %c2 = arith.constant 2 : index
    %5 = memref.load %arg2[%c2] : memref<18xf32, #tpu.memory_space<smem>>
    %c3 = arith.constant 3 : index
    %6 = memref.load %arg2[%c3] : memref<18xf32, #tpu.memory_space<smem>>
    %c4 = arith.constant 4 : index
    %7 = memref.load %arg2[%c4] : memref<18xf32, #tpu.memory_space<smem>>
    %c5 = arith.constant 5 : index
    %8 = memref.load %arg2[%c5] : memref<18xf32, #tpu.memory_space<smem>>
    %c6 = arith.constant 6 : index
    %9 = memref.load %arg2[%c6] : memref<18xf32, #tpu.memory_space<smem>>
    %c7 = arith.constant 7 : index
    %10 = memref.load %arg2[%c7] : memref<18xf32, #tpu.memory_space<smem>>
    %c8 = arith.constant 8 : index
    %11 = memref.load %arg2[%c8] : memref<18xf32, #tpu.memory_space<smem>>
    %c9 = arith.constant 9 : index
    %12 = memref.load %arg2[%c9] : memref<18xf32, #tpu.memory_space<smem>>
    %c10 = arith.constant 10 : index
    %13 = memref.load %arg2[%c10] : memref<18xf32, #tpu.memory_space<smem>>
    %c11 = arith.constant 11 : index
    %14 = memref.load %arg2[%c11] : memref<18xf32, #tpu.memory_space<smem>>
    %c12 = arith.constant 12 : index
    %15 = memref.load %arg2[%c12] : memref<18xf32, #tpu.memory_space<smem>>
    %c13 = arith.constant 13 : index
    %16 = memref.load %arg2[%c13] : memref<18xf32, #tpu.memory_space<smem>>
    %c14 = arith.constant 14 : index
    %17 = memref.load %arg2[%c14] : memref<18xf32, #tpu.memory_space<smem>>
    %c15 = arith.constant 15 : index
    %18 = memref.load %arg2[%c15] : memref<18xf32, #tpu.memory_space<smem>>
    %c16 = arith.constant 16 : index
    %19 = memref.load %arg2[%c16] : memref<18xf32, #tpu.memory_space<smem>>
    %c17 = arith.constant 17 : index
    %20 = memref.load %arg2[%c17] : memref<18xf32, #tpu.memory_space<smem>>
    %21 = arith.index_cast %arg1 : i32 to index
    %22 = memref.load %arg3[%21] : memref<40xf32, #tpu.memory_space<smem>>
    %c0_1 = arith.constant 0 : index
    %c0_2 = arith.constant 0 : index
    %23 = vector.load %arg17[%c0_1, %c0_2] : memref<16x128xf32, #tpu.memory_space<vmem>>, vector<16x128xf32>
    %c0_3 = arith.constant 0 : index
    %c0_4 = arith.constant 0 : index
    %24 = vector.load %arg18[%c0_3, %c0_4] : memref<16x128xf32, #tpu.memory_space<vmem>>, vector<16x128xf32>
    %c0_5 = arith.constant 0 : index
    %c0_6 = arith.constant 0 : index
    %25 = vector.load %arg19[%c0_5, %c0_6] : memref<16x128xf32, #tpu.memory_space<vmem>>, vector<16x128xf32>
    %26 = vector.broadcast %10 : f32 to vector<16x128xf32>
    %27 = arith.addf %25, %26 : vector<16x128xf32>
    %28 = vector.broadcast %22 : f32 to vector<16x128xf32>
    %29 = arith.cmpf ogt, %28, %27 : vector<16x128xf32>
    %cst = arith.constant 0.000000e+00 : f32
    %30 = arith.subf %cst, %14 : f32
    %31 = vector.broadcast %30 : f32 to vector<16x128xf32>
    %32 = arith.mulf %31, %23 : vector<16x128xf32>
    %33 = math.exp %32 : vector<16x128xf32>
    %cst_7 = arith.constant 1.000000e+00 : f32
    %34 = vector.broadcast %cst_7 : f32 to vector<16x128xf32>
    %35 = arith.addf %34, %33 : vector<16x128xf32>
    %36 = tpu.reciprocal %35 {approx = true} : vector<16x128xf32> -> vector<16x128xf32>
    %37 = vector.broadcast %16 : f32 to vector<16x128xf32>
    %38 = arith.subf %23, %37 : vector<16x128xf32>
    %39 = vector.broadcast %15 : f32 to vector<16x128xf32>
    %40 = arith.mulf %39, %38 : vector<16x128xf32>
    %c0_8 = arith.constant 0 : index
    %c0_9 = arith.constant 0 : index
    %c0_10 = arith.constant 0 : index
    %41 = vector.load %arg8[%c0_8, %c0_9, %c0_10] : memref<1x16x128xf32, #tpu.memory_space<vmem>>, vector<1x16x128xf32>
    %42 = vector.shape_cast %41 : vector<1x16x128xf32> to vector<16x128xf32>
    %43 = arith.mulf %40, %42 : vector<16x128xf32>
    %44 = vector.broadcast %18 : f32 to vector<16x128xf32>
    %45 = arith.subf %23, %44 : vector<16x128xf32>
    %46 = vector.broadcast %17 : f32 to vector<16x128xf32>
    %47 = arith.mulf %46, %45 : vector<16x128xf32>
    %c0_11 = arith.constant 0 : index
    %c0_12 = arith.constant 0 : index
    %c0_13 = arith.constant 0 : index
    %48 = vector.load %arg9[%c0_11, %c0_12, %c0_13] : memref<1x16x128xf32, #tpu.memory_space<vmem>>, vector<1x16x128xf32>
    %49 = vector.shape_cast %48 : vector<1x16x128xf32> to vector<16x128xf32>
    %50 = arith.mulf %47, %49 : vector<16x128xf32>
    %51 = arith.mulf %50, %36 : vector<16x128xf32>
    %52 = arith.addf %43, %51 : vector<16x128xf32>
    %53 = vector.broadcast %20 : f32 to vector<16x128xf32>
    %54 = arith.subf %23, %53 : vector<16x128xf32>
    %55 = vector.broadcast %19 : f32 to vector<16x128xf32>
    %56 = arith.mulf %55, %54 : vector<16x128xf32>
    %c0_14 = arith.constant 0 : index
    %c0_15 = arith.constant 0 : index
    %c0_16 = arith.constant 0 : index
    %57 = vector.load %arg10[%c0_14, %c0_15, %c0_16] : memref<1x16x128xf32, #tpu.memory_space<vmem>>, vector<1x16x128xf32>
    %58 = vector.shape_cast %57 : vector<1x16x128xf32> to vector<16x128xf32>
    %59 = arith.mulf %56, %58 : vector<16x128xf32>
    %60 = arith.addf %52, %59 : vector<16x128xf32>
    %cst_17 = arith.constant 0.000000e+00 : f32
    %61 = vector.broadcast %cst_17 : f32 to vector<16x128xf32>
    %62 = arith.select %29, %60, %61 : vector<16x128xi1>, vector<16x128xf32>
    %63 = vector.broadcast %4 : f32 to vector<16x128xf32>
    %64 = arith.cmpf oge, %23, %63 : vector<16x128xf32>
    %cst_18 = arith.constant 0.000000e+00 : f32
    %65 = vector.broadcast %cst_18 : f32 to vector<16x128xf32>
    %66 = arith.subf %65, %24 : vector<16x128xf32>
    %67 = vector.broadcast %12 : f32 to vector<16x128xf32>
    %68 = arith.mulf %66, %67 : vector<16x128xf32>
    %cst_19 = arith.constant 1.000000e+00 : f32
    %69 = vector.broadcast %cst_19 : f32 to vector<16x128xf32>
    %70 = arith.subf %69, %24 : vector<16x128xf32>
    %71 = vector.broadcast %13 : f32 to vector<16x128xf32>
    %72 = arith.mulf %70, %71 : vector<16x128xf32>
    %73 = arith.select %64, %68, %72 : vector<16x128xi1>, vector<16x128xf32>
    %74 = vector.broadcast %3 : f32 to vector<16x128xf32>
    %75 = arith.subf %23, %74 : vector<16x128xf32>
    %76 = vector.broadcast %6 : f32 to vector<16x128xf32>
    %77 = arith.mulf %76, %75 : vector<16x128xf32>
    %78 = vector.broadcast %7 : f32 to vector<16x128xf32>
    %79 = arith.mulf %78, %24 : vector<16x128xf32>
    %80 = vector.broadcast %5 : f32 to vector<16x128xf32>
    %81 = arith.subf %23, %80 : vector<16x128xf32>
    %82 = arith.mulf %79, %81 : vector<16x128xf32>
    %cst_20 = arith.constant 0.000000e+00 : f32
    %83 = vector.broadcast %cst_20 : f32 to vector<16x128xf32>
    %84 = arith.select %64, %82, %83 : vector<16x128xi1>, vector<16x128xf32>
    %cst_21 = arith.constant 0.000000e+00 : f32
    %85 = vector.broadcast %cst_21 : f32 to vector<16x128xf32>
    %86 = arith.subf %85, %77 : vector<16x128xf32>
    %87 = arith.subf %86, %84 : vector<16x128xf32>
    %88 = arith.subf %87, %62 : vector<16x128xf32>
    %c0_22 = arith.constant 0 : index
    %c0_23 = arith.constant 0 : index
    %c0_24 = arith.constant 0 : index
    %89 = vector.load %arg7[%c0_22, %c0_23, %c0_24] : memref<1x16x128xf32, #tpu.memory_space<vmem>>, vector<1x16x128xf32>
    %90 = vector.shape_cast %89 : vector<1x16x128xf32> to vector<16x128xf32>
    %91 = arith.addf %88, %90 : vector<16x128xf32>
    %92 = vector.broadcast %11 : f32 to vector<16x128xf32>
    %93 = arith.mulf %91, %92 : vector<16x128xf32>
    %cst_25 = arith.constant 0.000000e+00 : f32
    %94 = vector.broadcast %cst_25 : f32 to vector<16x128xf32>
    %95 = arith.subf %94, %77 : vector<16x128xf32>
    %96 = vector.broadcast %11 : f32 to vector<16x128xf32>
    %97 = arith.mulf %95, %96 : vector<16x128xf32>
    %98 = arith.select %29, %93, %97 : vector<16x128xi1>, vector<16x128xf32>
    %99 = arith.addf %24, %73 : vector<16x128xf32>
    %100 = arith.addf %23, %98 : vector<16x128xf32>
    %101 = vector.broadcast %8 : f32 to vector<16x128xf32>
    %102 = arith.cmpf oge, %100, %101 : vector<16x128xf32>
    %103 = arith.extui %102 : vector<16x128xi1> to vector<16x128xi32>
    %104 = arith.sitofp %103 : vector<16x128xi32> to vector<16x128xf32>
    %c0_26 = arith.constant 0 : index
    %c0_27 = arith.constant 0 : index
    %c0_28 = arith.constant 0 : index
    %105 = vector.load %arg11[%c0_26, %c0_27, %c0_28] : memref<1x16x128xf32, #tpu.memory_space<vmem>>, vector<1x16x128xf32>
    %106 = vector.shape_cast %105 : vector<1x16x128xf32> to vector<16x128xf32>
    %107 = vector.shape_cast %104 : vector<16x128xf32> to vector<1x16x128xf32>
    tpu.vector_store %arg11[%c0_26, %c0_27, %c0_28], %107 {strides = array<i32>} : memref<1x16x128xf32, #tpu.memory_space<vmem>>, vector<1x16x128xf32>,
    %108 = vector.broadcast %8 : f32 to vector<16x128xf32>
    %109 = arith.select %102, %108, %100 : vector<16x128xi1>, vector<16x128xf32>
    %c0_29 = arith.constant 0 : index
    %c0_30 = arith.constant 0 : index
    %c0_31 = arith.constant 0 : index
    %110 = vector.load %arg12[%c0_29, %c0_30, %c0_31] : memref<1x16x128xf32, #tpu.memory_space<vmem>>, vector<1x16x128xf32>
    %111 = vector.shape_cast %110 : vector<1x16x128xf32> to vector<16x128xf32>
    %112 = vector.shape_cast %109 : vector<16x128xf32> to vector<1x16x128xf32>
    tpu.vector_store %arg12[%c0_29, %c0_30, %c0_31], %112 {strides = array<i32>} : memref<1x16x128xf32, #tpu.memory_space<vmem>>, vector<1x16x128xf32>,
    %c0_32 = arith.constant 0 : index
    %c0_33 = arith.constant 0 : index
    %c0_34 = arith.constant 0 : index
    %113 = vector.load %arg13[%c0_32, %c0_33, %c0_34] : memref<1x16x128xf32, #tpu.memory_space<vmem>>, vector<1x16x128xf32>
    %114 = vector.shape_cast %113 : vector<1x16x128xf32> to vector<16x128xf32>
    %115 = vector.shape_cast %62 : vector<16x128xf32> to vector<1x16x128xf32>
    tpu.vector_store %arg13[%c0_32, %c0_33, %c0_34], %115 {strides = array<i32>} : memref<1x16x128xf32, #tpu.memory_space<vmem>>, vector<1x16x128xf32>,
    %116 = vector.broadcast %9 : f32 to vector<16x128xf32>
    %117 = arith.select %102, %116, %100 : vector<16x128xi1>, vector<16x128xf32>
    %c0_35 = arith.constant 0 : index
    %c0_36 = arith.constant 0 : index
    %118 = vector.load %arg17[%c0_35, %c0_36] : memref<16x128xf32, #tpu.memory_space<vmem>>, vector<16x128xf32>
    tpu.vector_store %arg17[%c0_35, %c0_36], %117 {strides = array<i32>} : memref<16x128xf32, #tpu.memory_space<vmem>>, vector<16x128xf32>,
    %c0_37 = arith.constant 0 : index
    %c0_38 = arith.constant 0 : index
    %119 = vector.load %arg18[%c0_37, %c0_38] : memref<16x128xf32, #tpu.memory_space<vmem>>, vector<16x128xf32>
    tpu.vector_store %arg18[%c0_37, %c0_38], %99 {strides = array<i32>} : memref<16x128xf32, #tpu.memory_space<vmem>>, vector<16x128xf32>,
    %120 = vector.broadcast %22 : f32 to vector<16x128xf32>
    %121 = arith.select %102, %120, %25 : vector<16x128xi1>, vector<16x128xf32>
    %c0_39 = arith.constant 0 : index
    %c0_40 = arith.constant 0 : index
    %122 = vector.load %arg19[%c0_39, %c0_40] : memref<16x128xf32, #tpu.memory_space<vmem>>, vector<16x128xf32>
    tpu.vector_store %arg19[%c0_39, %c0_40], %121 {strides = array<i32>} : memref<16x128xf32, #tpu.memory_space<vmem>>, vector<16x128xf32>,
    %c39_i32 = arith.constant 39 : i32
    %123 = arith.cmpi eq, %arg1, %c39_i32 : i32
    %124 = arith.extui %123 : i1 to i32
    %c0_i32_41 = arith.constant 0 : i32
    %125 = arith.cmpi ne, %124, %c0_i32_41 : i32
    scf.if %125 {
      %c0_42 = arith.constant 0 : index
      %c0_43 = arith.constant 0 : index
      %126 = vector.load %arg17[%c0_42, %c0_43] : memref<16x128xf32, #tpu.memory_space<vmem>>, vector<16x128xf32>
      %c0_44 = arith.constant 0 : index
      %c0_45 = arith.constant 0 : index
      %127 = vector.load %arg14[%c0_44, %c0_45] : memref<16x128xf32, #tpu.memory_space<vmem>>, vector<16x128xf32>
      tpu.vector_store %arg14[%c0_44, %c0_45], %126 {strides = array<i32>} : memref<16x128xf32, #tpu.memory_space<vmem>>, vector<16x128xf32>,
      %c0_46 = arith.constant 0 : index
      %c0_47 = arith.constant 0 : index
      %128 = vector.load %arg18[%c0_46, %c0_47] : memref<16x128xf32, #tpu.memory_space<vmem>>, vector<16x128xf32>
      %c0_48 = arith.constant 0 : index
      %c0_49 = arith.constant 0 : index
      %129 = vector.load %arg15[%c0_48, %c0_49] : memref<16x128xf32, #tpu.memory_space<vmem>>, vector<16x128xf32>
      tpu.vector_store %arg15[%c0_48, %c0_49], %128 {strides = array<i32>} : memref<16x128xf32, #tpu.memory_space<vmem>>, vector<16x128xf32>,
      %c0_50 = arith.constant 0 : index
      %c0_51 = arith.constant 0 : index
      %130 = vector.load %arg19[%c0_50, %c0_51] : memref<16x128xf32, #tpu.memory_space<vmem>>, vector<16x128xf32>
      %c0_52 = arith.constant 0 : index
      %c0_53 = arith.constant 0 : index
      %131 = vector.load %arg16[%c0_52, %c0_53] : memref<16x128xf32, #tpu.memory_space<vmem>>, vector<16x128xf32>
      tpu.vector_store %arg16[%c0_52, %c0_53], %130 {strides = array<i32>} : memref<16x128xf32, #tpu.memory_space<vmem>>, vector<16x128xf32>,
    } else {
    }
    return
  }
  func.func @transform_0(%arg0: i32, %arg1: i32) -> i32 {
    %c0_i32 = arith.constant 0 : i32
    %c0_i32_0 = arith.constant 0 : i32
    return %c0_i32 : i32
  }
  func.func @transform_1(%arg0: i32, %arg1: i32) -> i32 {
    %c0_i32 = arith.constant 0 : i32
    %c0_i32_0 = arith.constant 0 : i32
    return %c0_i32 : i32
  }
  func.func @transform_2(%arg0: i32, %arg1: i32) -> (i32, i32) {
    %c0_i32 = arith.constant 0 : i32
    %c0_i32_0 = arith.constant 0 : i32
    return %arg0, %c0_i32 : i32, i32
  }
  func.func @transform_3(%arg0: i32, %arg1: i32) -> (i32, i32) {
    %c0_i32 = arith.constant 0 : i32
    %c0_i32_0 = arith.constant 0 : i32
    return %arg0, %c0_i32 : i32, i32
  }
  func.func @transform_4(%arg0: i32, %arg1: i32) -> (i32, i32) {
    %c0_i32 = arith.constant 0 : i32
    %c0_i32_0 = arith.constant 0 : i32
    return %arg0, %c0_i32 : i32, i32
  }
  func.func @transform_5(%arg0: i32, %arg1: i32) -> (i32, i32, i32) {
    %c0_i32 = arith.constant 0 : i32
    %c0_i32_0 = arith.constant 0 : i32
    return %arg1, %arg0, %c0_i32 : i32, i32, i32
  }
  func.func @transform_6(%arg0: i32, %arg1: i32) -> (i32, i32, i32) {
    %c0_i32 = arith.constant 0 : i32
    %c0_i32_0 = arith.constant 0 : i32
    return %arg1, %arg0, %c0_i32 : i32, i32, i32
  }
  func.func @transform_7(%arg0: i32, %arg1: i32) -> (i32, i32, i32) {
    %c0_i32 = arith.constant 0 : i32
    %c0_i32_0 = arith.constant 0 : i32
    return %arg1, %arg0, %c0_i32 : i32, i32, i32
  }
  func.func @transform_8(%arg0: i32, %arg1: i32) -> (i32, i32, i32) {
    %c0_i32 = arith.constant 0 : i32
    %c0_i32_0 = arith.constant 0 : i32
    return %arg1, %arg0, %c0_i32 : i32, i32, i32
  }
  func.func @transform_9(%arg0: i32, %arg1: i32) -> (i32, i32, i32) {
    %c0_i32 = arith.constant 0 : i32
    %c0_i32_0 = arith.constant 0 : i32
    return %arg1, %arg0, %c0_i32 : i32, i32, i32
  }
  func.func @transform_10(%arg0: i32, %arg1: i32) -> (i32, i32, i32) {
    %c0_i32 = arith.constant 0 : i32
    %c0_i32_0 = arith.constant 0 : i32
    return %arg1, %arg0, %c0_i32 : i32, i32, i32
  }
  func.func @transform_11(%arg0: i32, %arg1: i32) -> (i32, i32, i32) {
    %c0_i32 = arith.constant 0 : i32
    %c0_i32_0 = arith.constant 0 : i32
    return %arg1, %arg0, %c0_i32 : i32, i32, i32
  }
  func.func @transform_12(%arg0: i32, %arg1: i32) -> (i32, i32) {
    %c0_i32 = arith.constant 0 : i32
    %c0_i32_0 = arith.constant 0 : i32
    return %arg0, %c0_i32 : i32, i32
  }
  func.func @transform_13(%arg0: i32, %arg1: i32) -> (i32, i32) {
    %c0_i32 = arith.constant 0 : i32
    %c0_i32_0 = arith.constant 0 : i32
    return %arg0, %c0_i32 : i32, i32
  }
  func.func @transform_14(%arg0: i32, %arg1: i32) -> (i32, i32) {
    %c0_i32 = arith.constant 0 : i32
    %c0_i32_0 = arith.constant 0 : i32
    return %arg0, %c0_i32 : i32, i32
  }
}

</mosaic_0001>

<llo_original>
// kernel: tpu_custom_call.1
$region0: #{tpu_custom_call.1}
  #allocation0 [shape = 'u32[]', space=smem, size = 0x4, offset = 0x4, fixed_abs, tag = 'smem constant byte address 0x4 - core index']
  #allocation1 [shape = 'u32[144,128]{1,0:T(1,128)}', space=vmem, size = 0x12000, scoped, tag = 'internal scratch']
  #allocation2 [shape = 'f32[16,128]{1,0:T(8,128)}', space=vmem, size = 0x2000, scoped, tag = 'scratch operand']
  #allocation3 [shape = 'f32[16,128]{1,0:T(8,128)}', space=vmem, size = 0x2000, scoped, tag = 'scratch operand']
  #allocation4 [shape = 'f32[16,128]{1,0:T(8,128)}', space=vmem, size = 0x2000, scoped, tag = 'scratch operand']
  %s0 = inlined_call_operand.hbm [shape: f32[18], index: 0, kind: input, shape index: {}]
  %s1 = inlined_call_operand.vmem [shape: f32[40], index: 1, kind: input, shape index: {}]
  %s2 = inlined_call_operand.hbm [shape: f32[16,128], index: 2, kind: input, shape index: {}]
  %s3 = inlined_call_operand.hbm [shape: f32[16,128], index: 3, kind: input, shape index: {}]
  %s4 = inlined_call_operand.hbm [shape: f32[16,128], index: 4, kind: input, shape index: {}]
  %s5 = inlined_call_operand.hbm [shape: f32[40,16,128], index: 5, kind: input, shape index: {}]
  %s6 = inlined_call_operand.hbm [shape: f32[40,16,128], index: 6, kind: input, shape index: {}]
  %s7 = inlined_call_operand.hbm [shape: f32[40,16,128], index: 7, kind: input, shape index: {}]
  %s8 = inlined_call_operand.hbm [shape: f32[40,16,128], index: 8, kind: input, shape index: {}]
  %s9 = inlined_call_operand.hbm [shape: f32[40,16,128], index: 9, kind: output, shape index: {0}]
  %s10 = inlined_call_operand.hbm [shape: f32[40,16,128], index: 10, kind: output, shape index: {1}]
  %s11 = inlined_call_operand.hbm [shape: f32[40,16,128], index: 11, kind: output, shape index: {2}]
  %s12 = inlined_call_operand.hbm [shape: f32[16,128], index: 12, kind: output, shape index: {3}]
  %s13 = inlined_call_operand.hbm [shape: f32[16,128], index: 13, kind: output, shape index: {4}]
  %s14 = inlined_call_operand.hbm [shape: f32[16,128], index: 14, kind: output, shape index: {5}]
  %15 = xla_tuple %s9, %s10, %s11, %s12, %s13, %s14
  %s16 = sld [smem:[#allocation0]]
  $region153: #{tpu_custom_call.1} parent=0
    _
  %s18 = ssub.s32 1, %s16
  %s19 = scalar_select 0, %s18, %s16
  $region1: #{tpu_custom_call.1} parent=0
    #allocation5 [shape = 'u8[512]{0}', space=smem, size = 0x200, scoped, tag = 'input window, operand 0, single buffered']
    #allocation6 [shape = 's32[2]{0}', space=sflag, size = 0x8, scoped, tag = 'scoped memory for tpu_custom_call.1']
    #allocation7 [shape = 's32[2]{0}', space=sflag, size = 0x8, scoped, tag = 'scoped memory for tpu_custom_call.1']
    #allocation8 [shape = 's32[2]{0}', space=sflag, size = 0x8, scoped, tag = 'scoped memory for tpu_custom_call.1']
    #allocation9 [shape = 's32[2]{0}', space=sflag, size = 0x8, scoped, tag = 'scoped memory for tpu_custom_call.1']
    #allocation10 [shape = 'u8[512]{0}', space=smem, size = 0x200, scoped, tag = 'input window, operand 1, single buffered']
    #allocation11 [shape = 'u8[8192]{0}', space=vmem, size = 0x2000, scoped, tag = 'input window, operand 2, single buffered']
    #allocation12 [shape = 'u8[8192]{0}', space=vmem, size = 0x2000, scoped, tag = 'input window, operand 3, single buffered']
    #allocation13 [shape = 's32[1]{0}', space=sflag, size = 0x4, scoped, tag = 'scoped memory for tpu_custom_call.1']
    #allocation14 [shape = 'u8[8192]{0}', space=vmem, size = 0x2000, scoped, tag = 'input window, operand 4, single buffered']
    #allocation15 [shape = 'u8[16384]{0}', space=vmem, size = 0x4000, scoped, tag = 'input window, operand 5']
    #allocation16 [shape = 's32[2]{0}', space=sflag, size = 0x8, scoped, tag = 'scoped memory for tpu_custom_call.1']
    #allocation17 [shape = 'u8[16384]{0}', space=vmem, size = 0x4000, scoped, tag = 'input window, operand 6']
    #allocation18 [shape = 'u8[16384]{0}', space=vmem, size = 0x4000, scoped, tag = 'input window, operand 7']
    #allocation19 [shape = 's32[2]{0}', space=sflag, size = 0x8, scoped, tag = 'scoped memory for tpu_custom_call.1']
    #allocation20 [shape = 'u8[16384]{0}', space=vmem, size = 0x4000, scoped, tag = 'input window, operand 8']
    #allocation21 [shape = 'u8[16384]{0}', space=vmem, size = 0x4000, scoped, tag = 'output window, operand 0']
    #allocation22 [shape = 'u8[16384]{0}', space=vmem, size = 0x4000, scoped, tag = 'output window, operand 1']
    #allocation23 [shape = 's32[2]{0}', space=sflag, size = 0x8, scoped, tag = 'scoped memory for tpu_custom_call.1']
    #allocation24 [shape = 'u8[16384]{0}', space=vmem, size = 0x4000, scoped, tag = 'output window, operand 2']
    #allocation25 [shape = 'u8[8192]{0}', space=vmem, size = 0x2000, scoped, tag = 'output window, operand 3, single buffered']
    #allocation26 [shape = 's32[1]{0}', space=sflag, size = 0x4, scoped, tag = 'scoped memory for tpu_custom_call.1']
    #allocation27 [shape = 'u8[8192]{0}', space=vmem, size = 0x2000, scoped, tag = 'output window, operand 4, single buffered']
    #allocation28 [shape = 'u8[8192]{0}', space=vmem, size = 0x2000, scoped, tag = 'output window, operand 5, single buffered']
    #allocation29 [shape = 's32[1]{0}', space=sflag, size = 0x4, scoped, tag = 'scoped memory for tpu_custom_call.1']
    %20 = vsyncpa [#allocation8], 0
    %21 = vsyncpa [#allocation9], 0
    %22 = vsyncpa [#allocation6], 0
    %23 = vsyncpa [#allocation13], 0
    %24 = vsyncpa [#allocation16], 0
    %s25 = scalar_lea.sflag [#allocation16], 1
    %26 = vsyncpa %s25, 0
    %27 = vsyncpa [#allocation19], 0
    %s28 = scalar_lea.sflag [#allocation19], 1
    %29 = vsyncpa %s28, 0
    %30 = vsyncpa [#allocation7], 0
    %s31 = scalar_lea.sflag [#allocation7], 1
    %32 = vsyncpa %s31, 0
    %33 = vsyncpa [#allocation23], 0
    %s34 = scalar_lea.sflag [#allocation23], 1
    %35 = vsyncpa %s34, 0
    %36 = vsyncpa [#allocation26], 0
    %37 = vsyncpa [#allocation29], 0
    loop: start=0, step=1, limit=42
    $region2: #{tpu_custom_call.1} parent=1 // loop_pre_header
      _
    $region3: #{tpu_custom_call.1} parent=1 // loop_header
      %s39 = sphi 0, %s43
      %p40 = scmp.ge.s32.totalorder %s39, 42
      %s46 = sphi 0, %s58
      %s47 = sphi 0, %s54
      %s48 = sphi 0, %s46
      %s49 = sphi 0, %s47
      %s50 = sphi 0, %s48
      %s51 = sphi 0, %s49
      %s59 = sphi 0, %s59
      %s61 = sphi 0, %s59
      %s62 = sphi 0, %s61
      %s76 = sphi 0, %s62
      %s80 = sphi 0, %s80
      %s82 = sphi 0, %s80
      %s83 = sphi 0, %s82
      %s97 = sphi 0, %s83
      %s103 = sphi 0, %s105
      %s106 = sphi 0, %s103
      %s107 = sphi 0, %s106
      %s123 = sphi 0, %s107
      %s129 = sphi 0, %s131
      %s132 = sphi 0, %s129
      %s133 = sphi 0, %s132
      %s149 = sphi 0, %s133
      %s155 = sphi 0, %s157
      %s158 = sphi 0, %s155
      %s159 = sphi 0, %s158
      %s175 = sphi 0, %s159
      %s183 = sphi 0, %s185
      %s186 = sphi 0, %s183
      %s187 = sphi 0, %s186
      %s203 = sphi 0, %s187
      %s211 = sphi 0, %s213
      %s214 = sphi 0, %s211
      %s215 = sphi 0, %s214
      %s231 = sphi 0, %s215
      %s239 = sphi 0, %s241
      %s242 = sphi 0, %s239
      %s243 = sphi 0, %s242
      %s259 = sphi 0, %s243
      %s267 = sphi 0, %s269
      %s270 = sphi 0, %s267
      %s271 = sphi 0, %s270
      %s287 = sphi 0, %s271
      %s295 = sphi 0, %s297
      %s298 = sphi 0, %s295
      %s299 = sphi 0, %s298
      %s315 = sphi 0, %s299
      %s323 = sphi 0, %s325
      %s326 = sphi 0, %s323
      %s327 = sphi 0, %s326
      %s343 = sphi 0, %s327
      %s351 = sphi 0, %s353
      %s354 = sphi 0, %s351
      %s355 = sphi 0, %s354
      %s371 = sphi 0, %s355
      %s377 = sphi 0, %s379
      %s380 = sphi 0, %s377
      %s381 = sphi 0, %s380
      %s397 = sphi 0, %s381
      %s403 = sphi 0, %s405
      %s406 = sphi 0, %s403
      %s407 = sphi 0, %s406
      %s423 = sphi 0, %s407
      %s429 = sphi 0, %s431
      %s432 = sphi 0, %s429
      %s433 = sphi 0, %s432
      %s449 = sphi 0, %s433
    $region4: #{tpu_custom_call.1} parent=1 // loop_header_branch
      %42 = sbr.rel (%p40) target = $region8
    $region5: #{tpu_custom_call.1} parent=1 // loop_body
      %s44 = ssub.s32 %s39, 1
      %s45 = ssub.s32 %s39, 2
      %s52 = sadd.s32 1, %s47
      %p53 = scmp.ge.s32.totalorder %s52, 40
      %s54 = scalar_select %p53, 0, %s52
      %s55 = sadd.s32 1, %s46
      %s56 = scalar_select %p53, %s55, %s46
      %p57 = scmp.ge.s32.totalorder %s56, 1
      %s58 = scalar_select %p57, 0, %s56
      %s60 = sadd.s32 %s59, 1
      %p63 = scmp.eq.s32.totalorder %s39, 39
      %p64 = scmp.ne.s32.totalorder %s59, %s61
      %p65 = scmp.eq.s32.totalorder %s39, 0
      %p66 = por %p64, %p65
      %p67 = scmp.ne.s32.totalorder %s59, %s61
      %p68 = scmp.eq.s32.totalorder %s44, 39
      %p69 = por %p67, %p68
      %p70 = scmp.ne.s32.totalorder %s61, %s62
      %p71 = scmp.eq.s32.totalorder %s44, 0
      %p72 = por %p70, %p71
      %p73 = scmp.ne.s32.totalorder %s61, %s62
      %p74 = scmp.eq.s32.totalorder %s45, 39
      %p75 = por %p73, %p74
      %p77 = scmp.ne.s32.totalorder %s62, %s76
      %p78 = scmp.eq.s32.totalorder %s45, 0
      %p79 = por %p77, %p78
      %s81 = sadd.s32 %s80, 1
      %p84 = scmp.eq.s32.totalorder %s39, 39
      %p85 = scmp.ne.s32.totalorder %s80, %s82
      %p86 = scmp.eq.s32.totalorder %s39, 0
      %p87 = por %p85, %p86
      %p88 = scmp.ne.s32.totalorder %s80, %s82
      %p89 = scmp.eq.s32.totalorder %s44, 39
      %p90 = por %p88, %p89
      %p91 = scmp.ne.s32.totalorder %s82, %s83
      %p92 = scmp.eq.s32.totalorder %s44, 0
      %p93 = por %p91, %p92
      %p94 = scmp.ne.s32.totalorder %s82, %s83
      %p95 = scmp.eq.s32.totalorder %s45, 39
      %p96 = por %p94, %p95
      %p98 = scmp.ne.s32.totalorder %s83, %s97
      %p99 = scmp.eq.s32.totalorder %s45, 0
      %p100 = por %p98, %p99
      %s101 = ssub.s32 %s46, %s58
      %p102 = scmp.eq.s32.totalorder %s101, 0
      %s104 = sadd.s32 %s103, 1
      %s105 = scalar_select %p102, %s103, %s104
      %p108 = pneg %p102
      %p109 = scmp.eq.s32.totalorder %s39, 39
      %p110 = por %p108, %p109
      %p111 = scmp.ne.s32.totalorder %s103, %s106
      %p112 = scmp.eq.s32.totalorder %s39, 0
      %p113 = por %p111, %p112
      %p114 = scmp.ne.s32.totalorder %s103, %s106
      %p115 = scmp.eq.s32.totalorder %s44, 39
      %p116 = por %p114, %p115
      %p117 = scmp.ne.s32.totalorder %s106, %s107
      %p118 = scmp.eq.s32.totalorder %s44, 0
      %p119 = por %p117, %p118
      %p120 = scmp.ne.s32.totalorder %s106, %s107
      %p121 = scmp.eq.s32.totalorder %s45, 39
      %p122 = por %p120, %p121
      %p124 = scmp.ne.s32.totalorder %s107, %s123
      %p125 = scmp.eq.s32.totalorder %s45, 0
      %p126 = por %p124, %p125
      %s127 = ssub.s32 %s46, %s58
      %p128 = scmp.eq.s32.totalorder %s127, 0
      %s130 = sadd.s32 %s129, 1
      %s131 = scalar_select %p128, %s129, %s130
      %p134 = pneg %p128
      %p135 = scmp.eq.s32.totalorder %s39, 39
      %p136 = por %p134, %p135
      %p137 = scmp.ne.s32.totalorder %s129, %s132
      %p138 = scmp.eq.s32.totalorder %s39, 0
      %p139 = por %p137, %p138
      %p140 = scmp.ne.s32.totalorder %s129, %s132
      %p141 = scmp.eq.s32.totalorder %s44, 39
      %p142 = por %p140, %p141
      %p143 = scmp.ne.s32.totalorder %s132, %s133
      %p144 = scmp.eq.s32.totalorder %s44, 0
      %p145 = por %p143, %p144
      %p146 = scmp.ne.s32.totalorder %s132, %s133
      %p147 = scmp.eq.s32.totalorder %s45, 39
      %p148 = por %p146, %p147
      %p150 = scmp.ne.s32.totalorder %s133, %s149
      %p151 = scmp.eq.s32.totalorder %s45, 0
      %p152 = por %p150, %p151
      %s153 = ssub.s32 %s46, %s58
      %p154 = scmp.eq.s32.totalorder %s153, 0
      %s156 = sadd.s32 %s155, 1
      %s157 = scalar_select %p154, %s155, %s156
      %p160 = pneg %p154
      %p161 = scmp.eq.s32.totalorder %s39, 39
      %p162 = por %p160, %p161
      %p163 = scmp.ne.s32.totalorder %s155, %s158
      %p164 = scmp.eq.s32.totalorder %s39, 0
      %p165 = por %p163, %p164
      %p166 = scmp.ne.s32.totalorder %s155, %s158
      %p167 = scmp.eq.s32.totalorder %s44, 39
      %p168 = por %p166, %p167
      %p169 = scmp.ne.s32.totalorder %s158, %s159
      %p170 = scmp.eq.s32.totalorder %s44, 0
      %p171 = por %p169, %p170
      %p172 = scmp.ne.s32.totalorder %s158, %s159
      %p173 = scmp.eq.s32.totalorder %s45, 39
      %p174 = por %p172, %p173
      %p176 = scmp.ne.s32.totalorder %s159, %s175
      %p177 = scmp.eq.s32.totalorder %s45, 0
      %p178 = por %p176, %p177
      %s179 = ssub.s32 %s47, %s54
      %s180 = ssub.s32 %s46, %s58
      %s181 = sor.u32 %s179, %s180
      %p182 = scmp.eq.s32.totalorder %s181, 0
      %s184 = sadd.s32 %s183, 1
      %s185 = scalar_select %p182, %s183, %s184
      %p188 = pneg %p182
      %p189 = scmp.eq.s32.totalorder %s39, 39
      %p190 = por %p188, %p189
      %p191 = scmp.ne.s32.totalorder %s183, %s186
      %p192 = scmp.eq.s32.totalorder %s39, 0
      %p193 = por %p191, %p192
      %p194 = scmp.ne.s32.totalorder %s183, %s186
      %p195 = scmp.eq.s32.totalorder %s44, 39
      %p196 = por %p194, %p195
      %p197 = scmp.ne.s32.totalorder %s186, %s187
      %p198 = scmp.eq.s32.totalorder %s44, 0
      %p199 = por %p197, %p198
      %p200 = scmp.ne.s32.totalorder %s186, %s187
      %p201 = scmp.eq.s32.totalorder %s45, 39
      %p202 = por %p200, %p201
      %p204 = scmp.ne.s32.totalorder %s187, %s203
      %p205 = scmp.eq.s32.totalorder %s45, 0
      %p206 = por %p204, %p205
      %s207 = ssub.s32 %s47, %s54
      %s208 = ssub.s32 %s46, %s58
      %s209 = sor.u32 %s207, %s208
      %p210 = scmp.eq.s32.totalorder %s209, 0
      %s212 = sadd.s32 %s211, 1
      %s213 = scalar_select %p210, %s211, %s212
      %p216 = pneg %p210
      %p217 = scmp.eq.s32.totalorder %s39, 39
      %p218 = por %p216, %p217
      %p219 = scmp.ne.s32.totalorder %s211, %s214
      %p220 = scmp.eq.s32.totalorder %s39, 0
      %p221 = por %p219, %p220
      %p222 = scmp.ne.s32.totalorder %s211, %s214
      %p223 = scmp.eq.s32.totalorder %s44, 39
      %p224 = por %p222, %p223
      %p225 = scmp.ne.s32.totalorder %s214, %s215
      %p226 = scmp.eq.s32.totalorder %s44, 0
      %p227 = por %p225, %p226
      %p228 = scmp.ne.s32.totalorder %s214, %s215
      %p229 = scmp.eq.s32.totalorder %s45, 39
      %p230 = por %p228, %p229
      %p232 = scmp.ne.s32.totalorder %s215, %s231
      %p233 = scmp.eq.s32.totalorder %s45, 0
      %p234 = por %p232, %p233
      %s235 = ssub.s32 %s47, %s54
      %s236 = ssub.s32 %s46, %s58
      %s237 = sor.u32 %s235, %s236
      %p238 = scmp.eq.s32.totalorder %s237, 0
      %s240 = sadd.s32 %s239, 1
      %s241 = scalar_select %p238, %s239, %s240
      %p244 = pneg %p238
      %p245 = scmp.eq.s32.totalorder %s39, 39
      %p246 = por %p244, %p245
      %p247 = scmp.ne.s32.totalorder %s239, %s242
      %p248 = scmp.eq.s32.totalorder %s39, 0
      %p249 = por %p247, %p248
      %p250 = scmp.ne.s32.totalorder %s239, %s242
      %p251 = scmp.eq.s32.totalorder %s44, 39
      %p252 = por %p250, %p251
      %p253 = scmp.ne.s32.totalorder %s242, %s243
      %p254 = scmp.eq.s32.totalorder %s44, 0
      %p255 = por %p253, %p254
      %p256 = scmp.ne.s32.totalorder %s242, %s243
      %p257 = scmp.eq.s32.totalorder %s45, 39
      %p258 = por %p256, %p257
      %p260 = scmp.ne.s32.totalorder %s243, %s259
      %p261 = scmp.eq.s32.totalorder %s45, 0
      %p262 = por %p260, %p261
      %s263 = ssub.s32 %s47, %s54
      %s264 = ssub.s32 %s46, %s58
      %s265 = sor.u32 %s263, %s264
      %p266 = scmp.eq.s32.totalorder %s265, 0
      %s268 = sadd.s32 %s267, 1
      %s269 = scalar_select %p266, %s267, %s268
      %p272 = pneg %p266
      %p273 = scmp.eq.s32.totalorder %s39, 39
      %p274 = por %p272, %p273
      %p275 = scmp.ne.s32.totalorder %s267, %s270
      %p276 = scmp.eq.s32.totalorder %s39, 0
      %p277 = por %p275, %p276
      %p278 = scmp.ne.s32.totalorder %s267, %s270
      %p279 = scmp.eq.s32.totalorder %s44, 39
      %p280 = por %p278, %p279
      %p281 = scmp.ne.s32.totalorder %s270, %s271
      %p282 = scmp.eq.s32.totalorder %s44, 0
      %p283 = por %p281, %p282
      %p284 = scmp.ne.s32.totalorder %s270, %s271
      %p285 = scmp.eq.s32.totalorder %s45, 39
      %p286 = por %p284, %p285
      %p288 = scmp.ne.s32.totalorder %s271, %s287
      %p289 = scmp.eq.s32.totalorder %s45, 0
      %p290 = por %p288, %p289
      %s291 = ssub.s32 %s47, %s54
      %s292 = ssub.s32 %s46, %s58
      %s293 = sor.u32 %s291, %s292
      %p294 = scmp.eq.s32.totalorder %s293, 0
      %s296 = sadd.s32 %s295, 1
      %s297 = scalar_select %p294, %s295, %s296
      %p300 = pneg %p294
      %p301 = scmp.eq.s32.totalorder %s39, 39
      %p302 = por %p300, %p301
      %p303 = scmp.ne.s32.totalorder %s295, %s298
      %p304 = scmp.eq.s32.totalorder %s39, 0
      %p305 = por %p303, %p304
      %p306 = scmp.ne.s32.totalorder %s295, %s298
      %p307 = scmp.eq.s32.totalorder %s44, 39
      %p308 = por %p306, %p307
      %p309 = scmp.ne.s32.totalorder %s298, %s299
      %p310 = scmp.eq.s32.totalorder %s44, 0
      %p311 = por %p309, %p310
      %p312 = scmp.ne.s32.totalorder %s298, %s299
      %p313 = scmp.eq.s32.totalorder %s45, 39
      %p314 = por %p312, %p313
      %p316 = scmp.ne.s32.totalorder %s299, %s315
      %p317 = scmp.eq.s32.totalorder %s45, 0
      %p318 = por %p316, %p317
      %s319 = ssub.s32 %s47, %s54
      %s320 = ssub.s32 %s46, %s58
      %s321 = sor.u32 %s319, %s320
      %p322 = scmp.eq.s32.totalorder %s321, 0
      %s324 = sadd.s32 %s323, 1
      %s325 = scalar_select %p322, %s323, %s324
      %p328 = pneg %p322
      %p329 = scmp.eq.s32.totalorder %s39, 39
      %p330 = por %p328, %p329
      %p331 = scmp.ne.s32.totalorder %s323, %s326
      %p332 = scmp.eq.s32.totalorder %s39, 0
      %p333 = por %p331, %p332
      %p334 = scmp.ne.s32.totalorder %s323, %s326
      %p335 = scmp.eq.s32.totalorder %s44, 39
      %p336 = por %p334, %p335
      %p337 = scmp.ne.s32.totalorder %s326, %s327
      %p338 = scmp.eq.s32.totalorder %s44, 0
      %p339 = por %p337, %p338
      %p340 = scmp.ne.s32.totalorder %s326, %s327
      %p341 = scmp.eq.s32.totalorder %s45, 39
      %p342 = por %p340, %p341
      %p344 = scmp.ne.s32.totalorder %s327, %s343
      %p345 = scmp.eq.s32.totalorder %s45, 0
      %p346 = por %p344, %p345
      %s347 = ssub.s32 %s47, %s54
      %s348 = ssub.s32 %s46, %s58
      %s349 = sor.u32 %s347, %s348
      %p350 = scmp.eq.s32.totalorder %s349, 0
      %s352 = sadd.s32 %s351, 1
      %s353 = scalar_select %p350, %s351, %s352
      %p356 = pneg %p350
      %p357 = scmp.eq.s32.totalorder %s39, 39
      %p358 = por %p356, %p357
      %p359 = scmp.ne.s32.totalorder %s351, %s354
      %p360 = scmp.eq.s32.totalorder %s39, 0
      %p361 = por %p359, %p360
      %p362 = scmp.ne.s32.totalorder %s351, %s354
      %p363 = scmp.eq.s32.totalorder %s44, 39
      %p364 = por %p362, %p363
      %p365 = scmp.ne.s32.totalorder %s354, %s355
      %p366 = scmp.eq.s32.totalorder %s44, 0
      %p367 = por %p365, %p366
      %p368 = scmp.ne.s32.totalorder %s354, %s355
      %p369 = scmp.eq.s32.totalorder %s45, 39
      %p370 = por %p368, %p369
      %p372 = scmp.ne.s32.totalorder %s355, %s371
      %p373 = scmp.eq.s32.totalorder %s45, 0
      %p374 = por %p372, %p373
      %s375 = ssub.s32 %s46, %s58
      %p376 = scmp.eq.s32.totalorder %s375, 0
      %s378 = sadd.s32 %s377, 1
      %s379 = scalar_select %p376, %s377, %s378
      %p382 = pneg %p376
      %p383 = scmp.eq.s32.totalorder %s39, 39
      %p384 = por %p382, %p383
      %p385 = scmp.ne.s32.totalorder %s377, %s380
      %p386 = scmp.eq.s32.totalorder %s39, 0
      %p387 = por %p385, %p386
      %p388 = scmp.ne.s32.totalorder %s377, %s380
      %p389 = scmp.eq.s32.totalorder %s44, 39
      %p390 = por %p388, %p389
      %p391 = scmp.ne.s32.totalorder %s380, %s381
      %p392 = scmp.eq.s32.totalorder %s44, 0
      %p393 = por %p391, %p392
      %p394 = scmp.ne.s32.totalorder %s380, %s381
      %p395 = scmp.eq.s32.totalorder %s45, 39
      %p396 = por %p394, %p395
      %p398 = scmp.ne.s32.totalorder %s381, %s397
      %p399 = scmp.eq.s32.totalorder %s45, 0
      %p400 = por %p398, %p399
      %s401 = ssub.s32 %s46, %s58
      %p402 = scmp.eq.s32.totalorder %s401, 0
      %s404 = sadd.s32 %s403, 1
      %s405 = scalar_select %p402, %s403, %s404
      %p408 = pneg %p402
      %p409 = scmp.eq.s32.totalorder %s39, 39
      %p410 = por %p408, %p409
      %p411 = scmp.ne.s32.totalorder %s403, %s406
      %p412 = scmp.eq.s32.totalorder %s39, 0
      %p413 = por %p411, %p412
      %p414 = scmp.ne.s32.totalorder %s403, %s406
      %p415 = scmp.eq.s32.totalorder %s44, 39
      %p416 = por %p414, %p415
      %p417 = scmp.ne.s32.totalorder %s406, %s407
      %p418 = scmp.eq.s32.totalorder %s44, 0
      %p419 = por %p417, %p418
      %p420 = scmp.ne.s32.totalorder %s406, %s407
      %p421 = scmp.eq.s32.totalorder %s45, 39
      %p422 = por %p420, %p421
      %p424 = scmp.ne.s32.totalorder %s407, %s423
      %p425 = scmp.eq.s32.totalorder %s45, 0
      %p426 = por %p424, %p425
      %s427 = ssub.s32 %s46, %s58
      %p428 = scmp.eq.s32.totalorder %s427, 0
      %s430 = sadd.s32 %s429, 1
      %s431 = scalar_select %p428, %s429, %s430
      %p434 = pneg %p428
      %p435 = scmp.eq.s32.totalorder %s39, 39
      %p436 = por %p434, %p435
      %p437 = scmp.ne.s32.totalorder %s429, %s432
      %p438 = scmp.eq.s32.totalorder %s39, 0
      %p439 = por %p437, %p438
      %p440 = scmp.ne.s32.totalorder %s429, %s432
      %p441 = scmp.eq.s32.totalorder %s44, 39
      %p442 = por %p440, %p441
      %p443 = scmp.ne.s32.totalorder %s432, %s433
      %p444 = scmp.eq.s32.totalorder %s44, 0
      %p445 = por %p443, %p444
      %p446 = scmp.ne.s32.totalorder %s432, %s433
      %p447 = scmp.eq.s32.totalorder %s45, 39
      %p448 = por %p446, %p447
      %p450 = scmp.ne.s32.totalorder %s433, %s449
      %p451 = scmp.eq.s32.totalorder %s45, 0
      %p452 = por %p450, %p451
      %p453 = scmp.le.s32.totalorder 1, %s39
      %p454 = scmp.lt.s32.totalorder %s39, 41
      %p455 = pnand %p453, %p454
      %p456 = pneg %p455
      // Predicated region
      $region9: #{tpu_custom_call.1} parent=5 // pred_check
        _
      $region10: #{tpu_custom_call.1} parent=5 // pred_check_branch
        %458 = sbr.rel (%p455) target = $region12
      $region11: #{tpu_custom_call.1} parent=5 // pred_region
        %s459 = ssub.s32 %s39, 1
        // Predicated region
        $region13: #{tpu_custom_call.1} parent=11 // pred_check
          %p460 = pneg %p72
        $region14: #{tpu_custom_call.1} parent=11 // pred_check_branch
          %462 = sbr.rel (%p460) target = $region16
        $region15: #{tpu_custom_call.1} parent=11 // pred_region
          %s464 = ssub.s32 16, 16
          %465 = vsyncadd [#allocation8], %s464
          %468 = dma.hbm_to_smem %s0, 16, [#allocation5], [#allocation8]
        $region16: #{tpu_custom_call.1} parent=11 // pred_fallthru
          _
        // Predicated region
        $region17: #{tpu_custom_call.1} parent=11 // pred_check
          %p469 = pneg %p93
        $region18: #{tpu_custom_call.1} parent=11 // pred_check_branch
          %471 = sbr.rel (%p469) target = $region20
        $region19: #{tpu_custom_call.1} parent=11 // pred_region
          %s473 = ssub.s32 16, 16
          %474 = vsyncadd [#allocation9], %s473
          %s476 = sshll.u32 %s1, 4
          %s477 = int_to_ptr.vmem [resolvable:$true] %s476
          %479 = dma.vmem_to_smem %s477, 16, [#allocation10], [#allocation9]
        $region20: #{tpu_custom_call.1} parent=11 // pred_fallthru
          _
        // Predicated region
        $region21: #{tpu_custom_call.1} parent=11 // pred_check
          %p480 = pneg %p119
        $region22: #{tpu_custom_call.1} parent=11 // pred_check_branch
          %482 = sbr.rel (%p480) target = $region24
        $region23: #{tpu_custom_call.1} parent=11 // pred_region
          %s483 = smul.u32 2, %s48
          %s485 = ssub.s32 256, 256
          %486 = vsyncadd [#allocation6], %s485
          %s487 = smul.addr %s483, 128
          %s488 = scalar_lea.hbm %s2, %s487
          %s489 = sshll.u32 [#allocation11], 4
          %s490 = int_to_ptr.vmem [resolvable:$true] %s489
          %495 = dma.hbm_to_vmem [thread:$0]  %s488, 256, %s490, [#allocation6], 128, 128, 8
        $region24: #{tpu_custom_call.1} parent=11 // pred_fallthru
          _
        // Predicated region
        $region25: #{tpu_custom_call.1} parent=11 // pred_check
          %p496 = pneg %p145
        $region26: #{tpu_custom_call.1} parent=11 // pred_check_branch
          %498 = sbr.rel (%p496) target = $region28
        $region27: #{tpu_custom_call.1} parent=11 // pred_region
          %s499 = smul.u32 2, %s48
          %s501 = ssub.s32 256, 256
          %502 = vsyncadd [#allocation13], %s501
          %s503 = smul.addr %s499, 128
          %s504 = scalar_lea.hbm %s3, %s503
          %s505 = sshll.u32 [#allocation12], 4
          %s506 = int_to_ptr.vmem [resolvable:$true] %s505
          %511 = dma.hbm_to_vmem [thread:$0]  %s504, 256, %s506, [#allocation13], 128, 128, 8
        $region28: #{tpu_custom_call.1} parent=11 // pred_fallthru
          _
        // Predicated region
        $region29: #{tpu_custom_call.1} parent=11 // pred_check
          %p512 = pneg %p171
        $region30: #{tpu_custom_call.1} parent=11 // pred_check_branch
          %514 = sbr.rel (%p512) target = $region32
        $region31: #{tpu_custom_call.1} parent=11 // pred_region
          %s515 = smul.u32 2, %s48
          %s517 = ssub.s32 256, 256
          %518 = vsyncadd [#allocation13], %s517
          %s519 = smul.addr %s515, 128
          %s520 = scalar_lea.hbm %s4, %s519
          %s521 = sshll.u32 [#allocation14], 4
          %s522 = int_to_ptr.vmem [resolvable:$true] %s521
          %527 = dma.hbm_to_vmem [thread:$0]  %s520, 256, %s522, [#allocation13], 128, 128, 8
        $region32: #{tpu_custom_call.1} parent=11 // pred_fallthru
          _
      $region12: #{tpu_custom_call.1} parent=5 // pred_fallthru
        _
      %p528 = scmp.lt.s32.totalorder %s39, 40
      // Predicated region
      $region33: #{tpu_custom_call.1} parent=5 // pred_check
        %p529 = pneg %p528
      $region34: #{tpu_custom_call.1} parent=5 // pred_check_branch
        %531 = sbr.rel (%p529) target = $region36
      $region35: #{tpu_custom_call.1} parent=5 // pred_region
        // Predicated region
        $region37: #{tpu_custom_call.1} parent=35 // pred_check
          %p532 = pneg %p193
        $region38: #{tpu_custom_call.1} parent=35 // pred_check_branch
          %534 = sbr.rel (%p532) target = $region40
        $region39: #{tpu_custom_call.1} parent=35 // pred_region
          %s535 = sand.u32 %s39, 1
          %s536 = scalar_lea.sflag [#allocation16], %s535
          %s537 = sand.u32 %s183, 1
          %s538 = smul.addr %s537, 16
          %s539 = scalar_lea.vmem [#allocation15], %s538
          %s540 = smul.u32 2, %s46
          %s542 = ssub.s32 256, 256
          %543 = vsyncadd %s536, %s542
          %s544 = smul.addr %s47, 2
          %s545 = sadd.s32 %s540, %s544
          %s546 = smul.addr %s545, 128
          %s547 = scalar_lea.hbm %s5, %s546
          %s548 = sshll.u32 %s539, 4
          %s549 = int_to_ptr.vmem [resolvable:$true] %s548
          %554 = dma.hbm_to_vmem [thread:$0]  %s547, 256, %s549, %s536, 128, 128, 8
        $region40: #{tpu_custom_call.1} parent=35 // pred_fallthru
          _
        // Predicated region
        $region41: #{tpu_custom_call.1} parent=35 // pred_check
          %p555 = pneg %p221
        $region42: #{tpu_custom_call.1} parent=35 // pred_check_branch
          %557 = sbr.rel (%p555) target = $region44
        $region43: #{tpu_custom_call.1} parent=35 // pred_region
          %s558 = sand.u32 %s39, 1
          %s559 = scalar_lea.sflag [#allocation16], %s558
          %s560 = sand.u32 %s211, 1
          %s561 = smul.addr %s560, 16
          %s562 = scalar_lea.vmem [#allocation17], %s561
          %s563 = smul.u32 2, %s46
          %s565 = ssub.s32 256, 256
          %566 = vsyncadd %s559, %s565
          %s567 = smul.addr %s47, 2
          %s568 = sadd.s32 %s563, %s567
          %s569 = smul.addr %s568, 128
          %s570 = scalar_lea.hbm %s6, %s569
          %s571 = sshll.u32 %s562, 4
          %s572 = int_to_ptr.vmem [resolvable:$true] %s571
          %577 = dma.hbm_to_vmem [thread:$0]  %s570, 256, %s572, %s559, 128, 128, 8
        $region44: #{tpu_custom_call.1} parent=35 // pred_fallthru
          _
        // Predicated region
        $region45: #{tpu_custom_call.1} parent=35 // pred_check
          %p578 = pneg %p249
        $region46: #{tpu_custom_call.1} parent=35 // pred_check_branch
          %580 = sbr.rel (%p578) target = $region48
        $region47: #{tpu_custom_call.1} parent=35 // pred_region
          %s581 = sand.u32 %s39, 1
          %s582 = scalar_lea.sflag [#allocation19], %s581
          %s583 = sand.u32 %s239, 1
          %s584 = smul.addr %s583, 16
          %s585 = scalar_lea.vmem [#allocation18], %s584
          %s586 = smul.u32 2, %s46
          %s588 = ssub.s32 256, 256
          %589 = vsyncadd %s582, %s588
          %s590 = smul.addr %s47, 2
          %s591 = sadd.s32 %s586, %s590
          %s592 = smul.addr %s591, 128
          %s593 = scalar_lea.hbm %s7, %s592
          %s594 = sshll.u32 %s585, 4
          %s595 = int_to_ptr.vmem [resolvable:$true] %s594
          %600 = dma.hbm_to_vmem [thread:$0]  %s593, 256, %s595, %s582, 128, 128, 8
        $region48: #{tpu_custom_call.1} parent=35 // pred_fallthru
          _
        // Predicated region
        $region49: #{tpu_custom_call.1} parent=35 // pred_check
          %p601 = pneg %p277
        $region50: #{tpu_custom_call.1} parent=35 // pred_check_branch
          %603 = sbr.rel (%p601) target = $region52
        $region51: #{tpu_custom_call.1} parent=35 // pred_region
          %s604 = sand.u32 %s39, 1
          %s605 = scalar_lea.sflag [#allocation19], %s604
          %s606 = sand.u32 %s267, 1
          %s607 = smul.addr %s606, 16
          %s608 = scalar_lea.vmem [#allocation20], %s607
          %s609 = smul.u32 2, %s46
          %s611 = ssub.s32 256, 256
          %612 = vsyncadd %s605, %s611
          %s613 = smul.addr %s47, 2
          %s614 = sadd.s32 %s609, %s613
          %s615 = smul.addr %s614, 128
          %s616 = scalar_lea.hbm %s8, %s615
          %s617 = sshll.u32 %s608, 4
          %s618 = int_to_ptr.vmem [resolvable:$true] %s617
          %623 = dma.hbm_to_vmem [thread:$0]  %s616, 256, %s618, %s605, 128, 128, 8
        $region52: #{tpu_custom_call.1} parent=35 // pred_fallthru
          _
      $region36: #{tpu_custom_call.1} parent=5 // pred_fallthru
        _
      %p624 = scmp.le.s32.totalorder 1, %s39
      %p625 = scmp.lt.s32.totalorder %s39, 41
      %p626 = pnand %p624, %p625
      %p627 = pneg %p626
      // Predicated region
      $region53: #{tpu_custom_call.1} parent=5 // pred_check
        _
      $region54: #{tpu_custom_call.1} parent=5 // pred_check_branch
        %629 = sbr.rel (%p626) target = $region56
      $region55: #{tpu_custom_call.1} parent=5 // pred_region
        %s630 = ssub.s32 %s39, 1
        // Predicated region
        $region57: #{tpu_custom_call.1} parent=55 // pred_check
          %p631 = pneg %p72
        $region58: #{tpu_custom_call.1} parent=55 // pred_check_branch
          %633 = sbr.rel (%p631) target = $region60
        $region59: #{tpu_custom_call.1} parent=55 // pred_region
          %634 = dma.done [#allocation8], 16
        $region60: #{tpu_custom_call.1} parent=55 // pred_fallthru
          _
        // Predicated region
        $region61: #{tpu_custom_call.1} parent=55 // pred_check
          %p635 = pneg %p93
        $region62: #{tpu_custom_call.1} parent=55 // pred_check_branch
          %637 = sbr.rel (%p635) target = $region64
        $region63: #{tpu_custom_call.1} parent=55 // pred_region
          %638 = dma.done [#allocation9], 16
        $region64: #{tpu_custom_call.1} parent=55 // pred_fallthru
          _
        // Predicated region
        $region65: #{tpu_custom_call.1} parent=55 // pred_check
          %p639 = pneg %p119
        $region66: #{tpu_custom_call.1} parent=55 // pred_check_branch
          %641 = sbr.rel (%p639) target = $region68
        $region67: #{tpu_custom_call.1} parent=55 // pred_region
          %642 = dma.done [#allocation6], 256
        $region68: #{tpu_custom_call.1} parent=55 // pred_fallthru
          _
        // Predicated region
        $region69: #{tpu_custom_call.1} parent=55 // pred_check
          %p643 = pneg %p145
        $region70: #{tpu_custom_call.1} parent=55 // pred_check_branch
          %645 = sbr.rel (%p643) target = $region72
        $region71: #{tpu_custom_call.1} parent=55 // pred_region
          %646 = dma.done [#allocation13], 256
        $region72: #{tpu_custom_call.1} parent=55 // pred_fallthru
          _
        // Predicated region
        $region73: #{tpu_custom_call.1} parent=55 // pred_check
          %p647 = pneg %p171
        $region74: #{tpu_custom_call.1} parent=55 // pred_check_branch
          %649 = sbr.rel (%p647) target = $region76
        $region75: #{tpu_custom_call.1} parent=55 // pred_region
          %650 = dma.done [#allocation13], 256
        $region76: #{tpu_custom_call.1} parent=55 // pred_fallthru
          _
        %s651 = sand.u32 %s44, 1
        %s652 = scalar_lea.sflag [#allocation16], %s651
        %s653 = sand.u32 %s186, 1
        %s654 = smul.addr %s653, 16
        %s655 = scalar_lea.vmem [#allocation15], %s654
        // Predicated region
        $region77: #{tpu_custom_call.1} parent=55 // pred_check
          %p656 = pneg %p199
        $region78: #{tpu_custom_call.1} parent=55 // pred_check_branch
          %658 = sbr.rel (%p656) target = $region80
        $region79: #{tpu_custom_call.1} parent=55 // pred_region
          %659 = dma.done %s652, 256
        $region80: #{tpu_custom_call.1} parent=55 // pred_fallthru
          _
        %s660 = sand.u32 %s44, 1
        %s661 = scalar_lea.sflag [#allocation16], %s660
        %s662 = sand.u32 %s214, 1
        %s663 = smul.addr %s662, 16
        %s664 = scalar_lea.vmem [#allocation17], %s663
        // Predicated region
        $region81: #{tpu_custom_call.1} parent=55 // pred_check
          %p665 = pneg %p227
        $region82: #{tpu_custom_call.1} parent=55 // pred_check_branch
          %667 = sbr.rel (%p665) target = $region84
        $region83: #{tpu_custom_call.1} parent=55 // pred_region
          %668 = dma.done %s661, 256
        $region84: #{tpu_custom_call.1} parent=55 // pred_fallthru
          _
        %s669 = sand.u32 %s44, 1
        %s670 = scalar_lea.sflag [#allocation19], %s669
        %s671 = sand.u32 %s242, 1
        %s672 = smul.addr %s671, 16
        %s673 = scalar_lea.vmem [#allocation18], %s672
        // Predicated region
        $region85: #{tpu_custom_call.1} parent=55 // pred_check
          %p674 = pneg %p255
        $region86: #{tpu_custom_call.1} parent=55 // pred_check_branch
          %676 = sbr.rel (%p674) target = $region88
        $region87: #{tpu_custom_call.1} parent=55 // pred_region
          %677 = dma.done %s670, 256
        $region88: #{tpu_custom_call.1} parent=55 // pred_fallthru
          _
        %s678 = sand.u32 %s44, 1
        %s679 = scalar_lea.sflag [#allocation19], %s678
        %s680 = sand.u32 %s270, 1
        %s681 = smul.addr %s680, 16
        %s682 = scalar_lea.vmem [#allocation20], %s681
        // Predicated region
        $region89: #{tpu_custom_call.1} parent=55 // pred_check
          %p683 = pneg %p283
        $region90: #{tpu_custom_call.1} parent=55 // pred_check_branch
          %685 = sbr.rel (%p683) target = $region92
        $region91: #{tpu_custom_call.1} parent=55 // pred_region
          %686 = dma.done %s679, 256
        $region92: #{tpu_custom_call.1} parent=55 // pred_fallthru
          _
        %687 = sfence
        %p688 = pneg %p72
        %p689 = pneg %p69
        %p690 = pneg %p93
        %p691 = pneg %p90
        %p692 = pneg %p119
        %p693 = pneg %p116
        %p694 = pneg %p145
        %p695 = pneg %p142
        %p696 = pneg %p171
        %p697 = pneg %p168
        %s698 = sand.u32 %s44, 1
        %s699 = scalar_lea.sflag [#allocation16], %s698
        %s700 = sand.u32 %s186, 1
        %s701 = smul.addr %s700, 16
        %s702 = scalar_lea.vmem [#allocation15], %s701
        %p703 = pneg %p199
        %p704 = pneg %p196
        %s705 = sand.u32 %s44, 1
        %s706 = scalar_lea.sflag [#allocation16], %s705
        %s707 = sand.u32 %s214, 1
        %s708 = smul.addr %s707, 16
        %s709 = scalar_lea.vmem [#allocation17], %s708
        %p710 = pneg %p227
        %p711 = pneg %p224
        %s712 = sand.u32 %s44, 1
        %s713 = scalar_lea.sflag [#allocation19], %s712
        %s714 = sand.u32 %s242, 1
        %s715 = smul.addr %s714, 16
        %s716 = scalar_lea.vmem [#allocation18], %s715
        %p717 = pneg %p255
        %p718 = pneg %p252
        %s719 = sand.u32 %s44, 1
        %s720 = scalar_lea.sflag [#allocation19], %s719
        %s721 = sand.u32 %s270, 1
        %s722 = smul.addr %s721, 16
        %s723 = scalar_lea.vmem [#allocation20], %s722
        %p724 = pneg %p283
        %p725 = pneg %p280
        %p726 = pneg %p311
        %p727 = pneg %p308
        %s728 = sand.u32 %s298, 1
        %s729 = scalar_lea.sflag [#allocation7], %s728
        %s730 = sand.u32 %s298, 1
        %s731 = smul.addr %s730, 16
        %s732 = scalar_lea.vmem [#allocation21], %s731
        %p733 = pneg %p339
        %p734 = pneg %p336
        %s735 = sand.u32 %s44, 1
        %s736 = scalar_lea.sflag [#allocation23], %s735
        %s737 = sand.u32 %s326, 1
        %s738 = smul.addr %s737, 16
        %s739 = scalar_lea.vmem [#allocation22], %s738
        %p740 = pneg %p367
        %p741 = pneg %p364
        %s742 = sand.u32 %s44, 1
        %s743 = scalar_lea.sflag [#allocation23], %s742
        %s744 = sand.u32 %s354, 1
        %s745 = smul.addr %s744, 16
        %s746 = scalar_lea.vmem [#allocation24], %s745
        %p747 = pneg %p393
        %p748 = pneg %p390
        %p749 = pneg %p419
        %p750 = pneg %p416
        %p751 = pneg %p445
        %p752 = pneg %p442
        %s753 = smul.u32 2, %s48
        %s754 = smul.u32 2, %s48
        %s755 = smul.u32 2, %s48
        %s756 = smul.u32 2, %s48
        %s757 = smul.u32 2, %s48
        %s758 = smul.u32 2, %s48
        %s759 = smul.u32 2, %s48
        %s760 = smul.u32 2, %s48
        %s761 = smul.u32 2, %s48
        %s762 = smul.u32 2, %s48
        %s763 = smul.u32 2, %s48
        %s764 = smul.u32 2, %s48
        %s765 = smul.u32 2, %s48
        %p766 = scmp.eq.s32.totalorder %s49, 0
        // Predicated region
        $region93: #{tpu_custom_call.1} parent=55 // pred_check
          %p767 = pneg %p766
        $region94: #{tpu_custom_call.1} parent=55 // pred_check_branch
          %769 = sbr.rel (%p767) target = $region96
        $region95: #{tpu_custom_call.1} parent=55 // pred_region
          %v770 = vld [vmem:[#allocation11] sm:$0xff]
          %v771 = vld [vmem:[#allocation11 + $0x8] sm:$0xff]
          %772 = vst [vmem:[#allocation2] sm:$0xff] %v770
          %773 = vst [vmem:[#allocation2 + $0x8] sm:$0xff] %v771
          %v774 = vld [vmem:[#allocation12] sm:$0xff]
          %v775 = vld [vmem:[#allocation12 + $0x8] sm:$0xff]
          %776 = vst [vmem:[#allocation3] sm:$0xff] %v774
          %777 = vst [vmem:[#allocation3 + $0x8] sm:$0xff] %v775
          %v778 = vld [vmem:[#allocation14] sm:$0xff]
          %v779 = vld [vmem:[#allocation14 + $0x8] sm:$0xff]
          %780 = vst [vmem:[#allocation4] sm:$0xff] %v778
          %781 = vst [vmem:[#allocation4 + $0x8] sm:$0xff] %v779
        $region96: #{tpu_custom_call.1} parent=55 // pred_fallthru
          _
        %s782 = sld [smem:[#allocation5]]
        %s783 = sld [smem:[#allocation5 + $0x1]]
        %s784 = sld [smem:[#allocation5 + $0x2]]
        %s785 = sld [smem:[#allocation5 + $0x3]]
        %s786 = sld [smem:[#allocation5 + $0x4]]
        %s787 = sld [smem:[#allocation5 + $0x5]]
        %s788 = sld [smem:[#allocation5 + $0x6]]
        %s789 = sld [smem:[#allocation5 + $0x7]]
        %s790 = sld [smem:[#allocation5 + $0x8]]
        %s791 = sld [smem:[#allocation5 + $0x9]]
        %s792 = sld [smem:[#allocation5 + $0xa]]
        %s793 = sld [smem:[#allocation5 + $0xb]]
        %s794 = sld [smem:[#allocation5 + $0xc]]
        %s795 = sld [smem:[#allocation5 + $0xd]]
        %s796 = sld [smem:[#allocation5 + $0xe]]
        %s797 = sld [smem:[#allocation5 + $0xf]]
        %s798 = sld [smem:[#allocation5 + $0x10]]
        %s799 = sld [smem:[#allocation5 + $0x11]]
        %s800 = sld [smem:[#allocation10 + %s49]]
        %v801 = vld [vmem:[#allocation2] sm:$0xff]
        %v802 = vld [vmem:[#allocation2 + $0x8] sm:$0xff]
        %v803 = vld [vmem:[#allocation3] sm:$0xff]
        %v804 = vld [vmem:[#allocation3 + $0x8] sm:$0xff]
        %v805 = vld [vmem:[#allocation4] sm:$0xff]
        %v806 = vld [vmem:[#allocation4 + $0x8] sm:$0xff]
        %v807 = vstv %s789
        %v808 = vadd.f32 %v805, %v807
        %v809 = vadd.f32 %v806, %v807
        %v810 = vstv %s800
        %vm811 = vcmp.gt.f32.partialorder %v810, %v808
        %vm812 = vcmp.gt.f32.partialorder %v810, %v809
        %s813 = ssub.f32 0.0, %s793
        %v814 = vstv %s813
        %v815 = vmul.f32 %v814, %v801
        %v816 = vmul.f32 %v814, %v802
        %v817 = vmul.f32 %v815, 1.442695
        %v818 = vpow.pop %v817
        %v819 = vmul.f32 %v816, 1.442695
        %v820 = vpow.pop %v819
        %v821 = vadd.f32 %v818, 1.0
        %v822 = vadd.f32 %v820, 1.0
        %v823 = vrcp.pop %v821
        %v824 = vrcp.pop %v822
        %v825 = vstv %s795
        %v826 = vsub.f32 %v801, %v825
        %v827 = vsub.f32 %v802, %v825
        %v828 = vstv %s794
        %v829 = vmul.f32 %v828, %v826
        %v830 = vmul.f32 %v828, %v827
        %v831 = vld [vmem:[%s664] sm:$0xff]
        %v832 = vld [vmem:[%s664 + $0x8] sm:$0xff]
        %v833 = vmul.f32 %v829, %v831
        %v834 = vmul.f32 %v830, %v832
        %v835 = vstv %s797
        %v836 = vsub.f32 %v801, %v835
        %v837 = vsub.f32 %v802, %v835
        %v838 = vstv %s796
        %v839 = vmul.f32 %v838, %v836
        %v840 = vmul.f32 %v838, %v837
        %v841 = vld [vmem:[%s673] sm:$0xff]
        %v842 = vld [vmem:[%s673 + $0x8] sm:$0xff]
        %v843 = vmul.f32 %v839, %v841
        %v844 = vmul.f32 %v840, %v842
        %v845 = vmul.f32 %v843, %v823
        %v846 = vmul.f32 %v844, %v824
        %v847 = vadd.f32 %v833, %v845
        %v848 = vadd.f32 %v834, %v846
        %v849 = vstv %s799
        %v850 = vsub.f32 %v801, %v849
        %v851 = vsub.f32 %v802, %v849
        %v852 = vstv %s798
        %v853 = vmul.f32 %v852, %v850
        %v854 = vmul.f32 %v852, %v851
        %v855 = vld [vmem:[%s682] sm:$0xff]
        %v856 = vld [vmem:[%s682 + $0x8] sm:$0xff]
        %v857 = vmul.f32 %v853, %v855
        %v858 = vmul.f32 %v854, %v856
        %v859 = vadd.f32 %v847, %v857
        %v860 = vadd.f32 %v848, %v858
        %v861 = vsel %vm811, %v859, 0.0
        %v862 = vsel %vm812, %v860, 0.0
        %v863 = vstv %s783
        %vm864 = vcmp.ge.f32.partialorder %v801, %v863
        %vm865 = vcmp.ge.f32.partialorder %v802, %v863
        %v866 = vsub.f32 0.0, %v803
        %v867 = vsub.f32 0.0, %v804
        %v868 = vstv %s791
        %v869 = vmul.f32 %v866, %v868
        %v870 = vmul.f32 %v867, %v868
        %v871 = vsub.f32 1.0, %v803
        %v872 = vsub.f32 1.0, %v804
        %v873 = vstv %s792
        %v874 = vmul.f32 %v871, %v873
        %v875 = vmul.f32 %v872, %v873
        %v876 = vsel %vm864, %v869, %v874
        %v877 = vsel %vm865, %v870, %v875
        %v878 = vstv %s782
        %v879 = vsub.f32 %v801, %v878
        %v880 = vsub.f32 %v802, %v878
        %v881 = vstv %s785
        %v882 = vmul.f32 %v881, %v879
        %v883 = vmul.f32 %v881, %v880
        %v884 = vstv %s786
        %v885 = vmul.f32 %v884, %v803
        %v886 = vmul.f32 %v884, %v804
        %v887 = vstv %s784
        %v888 = vsub.f32 %v801, %v887
        %v889 = vsub.f32 %v802, %v887
        %v890 = vmul.f32 %v885, %v888
        %v891 = vmul.f32 %v886, %v889
        %v892 = vsel %vm864, %v890, 0.0
        %v893 = vsel %vm865, %v891, 0.0
        %v894 = vsub.f32 0.0, %v882
        %v895 = vsub.f32 0.0, %v883
        %v896 = vsub.f32 %v894, %v892
        %v897 = vsub.f32 %v895, %v893
        %v898 = vsub.f32 %v896, %v861
        %v899 = vsub.f32 %v897, %v862
        %v900 = vld [vmem:[%s655] sm:$0xff]
        %v901 = vld [vmem:[%s655 + $0x8] sm:$0xff]
        %v902 = vadd.f32 %v898, %v900
        %v903 = vadd.f32 %v899, %v901
        %v904 = vstv %s790
        %v905 = vmul.f32 %v902, %v904
        %v906 = vmul.f32 %v903, %v904
        %v907 = vmul.f32 %v894, %v904
        %v908 = vmul.f32 %v895, %v904
        %v909 = vsel %vm811, %v905, %v907
        %v910 = vsel %vm812, %v906, %v908
        %v911 = vadd.f32 %v803, %v876
        %v912 = vadd.f32 %v804, %v877
        %v913 = vadd.f32 %v801, %v909
        %v914 = vadd.f32 %v802, %v910
        %v915 = vstv %s787
        %vm916 = vcmp.ge.f32.partialorder %v913, %v915
        %vm917 = vcmp.ge.f32.partialorder %v914, %v915
        %v918 = vsel %vm916, 1, 0
        %v919 = vsel %vm917, 1, 0
        %v920 = vcvt.s32.f32 %v918
        %v921 = vcvt.s32.f32 %v919
        %922 = vst [vmem:[%s732] sm:$0xff] %v920
        %923 = vst [vmem:[%s732 + $0x8] sm:$0xff] %v921
        %v924 = vsel %vm916, %v915, %v913
        %v925 = vsel %vm917, %v915, %v914
        %926 = vst [vmem:[%s739] sm:$0xff] %v924
        %927 = vst [vmem:[%s739 + $0x8] sm:$0xff] %v925
        %928 = vst [vmem:[%s746] sm:$0xff] %v861
        %929 = vst [vmem:[%s746 + $0x8] sm:$0xff] %v862
        %v930 = vstv %s788
        %v931 = vsel %vm916, %v930, %v913
        %v932 = vsel %vm917, %v930, %v914
        %933 = vst [vmem:[#allocation2] sm:$0xff] %v931
        %934 = vst [vmem:[#allocation2 + $0x8] sm:$0xff] %v932
        %935 = vst [vmem:[#allocation3] sm:$0xff] %v911
        %936 = vst [vmem:[#allocation3 + $0x8] sm:$0xff] %v912
        %v937 = vsel %vm916, %v810, %v805
        %v938 = vsel %vm917, %v810, %v806
        %939 = vst [vmem:[#allocation4] sm:$0xff] %v937
        %940 = vst [vmem:[#allocation4 + $0x8] sm:$0xff] %v938
        %p941 = scmp.eq.s32.totalorder %s49, 39
        // Predicated region
        $region97: #{tpu_custom_call.1} parent=55 // pred_check
          %p942 = pneg %p941
        $region98: #{tpu_custom_call.1} parent=55 // pred_check_branch
          %944 = sbr.rel (%p942) target = $region100
        $region99: #{tpu_custom_call.1} parent=55 // pred_region
          %v945 = vld [vmem:[#allocation2] sm:$0xff]
          %v946 = vld [vmem:[#allocation2 + $0x8] sm:$0xff]
          %947 = vst [vmem:[#allocation25] sm:$0xff] %v945
          %948 = vst [vmem:[#allocation25 + $0x8] sm:$0xff] %v946
          %v949 = vld [vmem:[#allocation3] sm:$0xff]
          %v950 = vld [vmem:[#allocation3 + $0x8] sm:$0xff]
          %951 = vst [vmem:[#allocation27] sm:$0xff] %v949
          %952 = vst [vmem:[#allocation27 + $0x8] sm:$0xff] %v950
          %v953 = vld [vmem:[#allocation4] sm:$0xff]
          %v954 = vld [vmem:[#allocation4 + $0x8] sm:$0xff]
          %955 = vst [vmem:[#allocation28] sm:$0xff] %v953
          %956 = vst [vmem:[#allocation28 + $0x8] sm:$0xff] %v954
        $region100: #{tpu_custom_call.1} parent=55 // pred_fallthru
          _
        %s957 = sand.u32 %s298, 1
        %s958 = scalar_lea.sflag [#allocation7], %s957
        %s959 = sand.u32 %s298, 1
        %s960 = smul.addr %s959, 16
        %s961 = scalar_lea.vmem [#allocation21], %s960
        %s962 = sand.u32 %s44, 1
        %s963 = scalar_lea.sflag [#allocation23], %s962
        %s964 = sand.u32 %s326, 1
        %s965 = smul.addr %s964, 16
        %s966 = scalar_lea.vmem [#allocation22], %s965
        %s967 = sand.u32 %s44, 1
        %s968 = scalar_lea.sflag [#allocation23], %s967
        %s969 = sand.u32 %s354, 1
        %s970 = smul.addr %s969, 16
        %s971 = scalar_lea.vmem [#allocation24], %s970
        // Predicated region
        $region101: #{tpu_custom_call.1} parent=55 // pred_check
          %p972 = pneg %p308
        $region102: #{tpu_custom_call.1} parent=55 // pred_check_branch
          %974 = sbr.rel (%p972) target = $region104
        $region103: #{tpu_custom_call.1} parent=55 // pred_region
          %s975 = smul.u32 2, %s48
          %s977 = ssub.s32 256, 256
          %978 = vsyncadd %s958, %s977
          %s979 = smul.addr %s49, 2
          %s980 = sadd.s32 %s975, %s979
          %s981 = smul.addr %s980, 128
          %s982 = scalar_lea.hbm %s9, %s981
          %s983 = sshll.u32 %s961, 4
          %s984 = int_to_ptr.vmem [resolvable:$true] %s983
          %989 = dma.vmem_to_hbm [thread:$0]  %s984, 256, %s982, %s958, 128, 128, 8
        $region104: #{tpu_custom_call.1} parent=55 // pred_fallthru
          _
        // Predicated region
        $region105: #{tpu_custom_call.1} parent=55 // pred_check
          %p990 = pneg %p336
        $region106: #{tpu_custom_call.1} parent=55 // pred_check_branch
          %992 = sbr.rel (%p990) target = $region108
        $region107: #{tpu_custom_call.1} parent=55 // pred_region
          %s993 = smul.u32 2, %s48
          %s995 = ssub.s32 256, 256
          %996 = vsyncadd %s963, %s995
          %s997 = smul.addr %s49, 2
          %s998 = sadd.s32 %s993, %s997
          %s999 = smul.addr %s998, 128
          %s1000 = scalar_lea.hbm %s10, %s999
          %s1001 = sshll.u32 %s966, 4
          %s1002 = int_to_ptr.vmem [resolvable:$true] %s1001
          %1007 = dma.vmem_to_hbm [thread:$0]  %s1002, 256, %s1000, %s963, 128, 128, 8
        $region108: #{tpu_custom_call.1} parent=55 // pred_fallthru
          _
        // Predicated region
        $region109: #{tpu_custom_call.1} parent=55 // pred_check
          %p1008 = pneg %p364
        $region110: #{tpu_custom_call.1} parent=55 // pred_check_branch
          %1010 = sbr.rel (%p1008) target = $region112
        $region111: #{tpu_custom_call.1} parent=55 // pred_region
          %s1011 = smul.u32 2, %s48
          %s1013 = ssub.s32 256, 256
          %1014 = vsyncadd %s968, %s1013
          %s1015 = smul.addr %s49, 2
          %s1016 = sadd.s32 %s1011, %s1015
          %s1017 = smul.addr %s1016, 128
          %s1018 = scalar_lea.hbm %s11, %s1017
          %s1019 = sshll.u32 %s971, 4
          %s1020 = int_to_ptr.vmem [resolvable:$true] %s1019
          %1025 = dma.vmem_to_hbm [thread:$0]  %s1020, 256, %s1018, %s968, 128, 128, 8
        $region112: #{tpu_custom_call.1} parent=55 // pred_fallthru
          _
        // Predicated region
        $region113: #{tpu_custom_call.1} parent=55 // pred_check
          %p1026 = pneg %p390
        $region114: #{tpu_custom_call.1} parent=55 // pred_check_branch
          %1028 = sbr.rel (%p1026) target = $region116
        $region115: #{tpu_custom_call.1} parent=55 // pred_region
          %s1029 = smul.u32 2, %s48
          %s1031 = ssub.s32 256, 256
          %1032 = vsyncadd [#allocation26], %s1031
          %s1033 = smul.addr %s1029, 128
          %s1034 = scalar_lea.hbm %s12, %s1033
          %s1035 = sshll.u32 [#allocation25], 4
          %s1036 = int_to_ptr.vmem [resolvable:$true] %s1035
          %1041 = dma.vmem_to_hbm [thread:$0]  %s1036, 256, %s1034, [#allocation26], 128, 128, 8
        $region116: #{tpu_custom_call.1} parent=55 // pred_fallthru
          _
        // Predicated region
        $region117: #{tpu_custom_call.1} parent=55 // pred_check
          %p1042 = pneg %p416
        $region118: #{tpu_custom_call.1} parent=55 // pred_check_branch
          %1044 = sbr.rel (%p1042) target = $region120
        $region119: #{tpu_custom_call.1} parent=55 // pred_region
          %s1045 = smul.u32 2, %s48
          %s1047 = ssub.s32 256, 256
          %1048 = vsyncadd [#allocation26], %s1047
          %s1049 = smul.addr %s1045, 128
          %s1050 = scalar_lea.hbm %s13, %s1049
          %s1051 = sshll.u32 [#allocation27], 4
          %s1052 = int_to_ptr.vmem [resolvable:$true] %s1051
          %1057 = dma.vmem_to_hbm [thread:$0]  %s1052, 256, %s1050, [#allocation26], 128, 128, 8
        $region120: #{tpu_custom_call.1} parent=55 // pred_fallthru
          _
        // Predicated region
        $region121: #{tpu_custom_call.1} parent=55 // pred_check
          %p1058 = pneg %p442
        $region122: #{tpu_custom_call.1} parent=55 // pred_check_branch
          %1060 = sbr.rel (%p1058) target = $region124
        $region123: #{tpu_custom_call.1} parent=55 // pred_region
          %s1061 = smul.u32 2, %s48
          %s1063 = ssub.s32 256, 256
          %1064 = vsyncadd [#allocation29], %s1063
          %s1065 = smul.addr %s1061, 128
          %s1066 = scalar_lea.hbm %s14, %s1065
          %s1067 = sshll.u32 [#allocation28], 4
          %s1068 = int_to_ptr.vmem [resolvable:$true] %s1067
          %1073 = dma.vmem_to_hbm [thread:$0]  %s1068, 256, %s1066, [#allocation29], 128, 128, 8
        $region124: #{tpu_custom_call.1} parent=55 // pred_fallthru
          _
        // Predicated region
        $region125: #{tpu_custom_call.1} parent=55 // pred_check
          %p1074 = pneg %p390
        $region126: #{tpu_custom_call.1} parent=55 // pred_check_branch
          %1076 = sbr.rel (%p1074) target = $region128
        $region127: #{tpu_custom_call.1} parent=55 // pred_region
          %1077 = dma.done [#allocation26], 256
        $region128: #{tpu_custom_call.1} parent=55 // pred_fallthru
          _
        // Predicated region
        $region129: #{tpu_custom_call.1} parent=55 // pred_check
          %p1078 = pneg %p416
        $region130: #{tpu_custom_call.1} parent=55 // pred_check_branch
          %1080 = sbr.rel (%p1078) target = $region132
        $region131: #{tpu_custom_call.1} parent=55 // pred_region
          %1081 = dma.done [#allocation26], 256
        $region132: #{tpu_custom_call.1} parent=55 // pred_fallthru
          _
        // Predicated region
        $region133: #{tpu_custom_call.1} parent=55 // pred_check
          %p1082 = pneg %p442
        $region134: #{tpu_custom_call.1} parent=55 // pred_check_branch
          %1084 = sbr.rel (%p1082) target = $region136
        $region135: #{tpu_custom_call.1} parent=55 // pred_region
          %1085 = dma.done [#allocation29], 256
        $region136: #{tpu_custom_call.1} parent=55 // pred_fallthru
          _
      $region56: #{tpu_custom_call.1} parent=5 // pred_fallthru
        _
      %p1086 = scmp.le.s32.totalorder 2, %s39
      // Predicated region
      $region137: #{tpu_custom_call.1} parent=5 // pred_check
        %p1087 = pneg %p1086
      $region138: #{tpu_custom_call.1} parent=5 // pred_check_branch
        %1089 = sbr.rel (%p1087) target = $region140
      $region139: #{tpu_custom_call.1} parent=5 // pred_region
        %s1090 = ssub.s32 %s39, 2
        // Predicated region
        $region141: #{tpu_custom_call.1} parent=139 // pred_check
          %p1091 = pneg %p314
        $region142: #{tpu_custom_call.1} parent=139 // pred_check_branch
          %1093 = sbr.rel (%p1091) target = $region144
        $region143: #{tpu_custom_call.1} parent=139 // pred_region
          %s1094 = sand.u32 %s299, 1
          %s1095 = scalar_lea.sflag [#allocation7], %s1094
          %s1096 = sand.u32 %s299, 1
          %s1097 = smul.addr %s1096, 16
          %s1098 = scalar_lea.vmem [#allocation21], %s1097
          %1099 = dma.done %s1095, 256
        $region144: #{tpu_custom_call.1} parent=139 // pred_fallthru
          _
        // Predicated region
        $region145: #{tpu_custom_call.1} parent=139 // pred_check
          %p1100 = pneg %p342
        $region146: #{tpu_custom_call.1} parent=139 // pred_check_branch
          %1102 = sbr.rel (%p1100) target = $region148
        $region147: #{tpu_custom_call.1} parent=139 // pred_region
          %s1103 = sand.u32 %s45, 1
          %s1104 = scalar_lea.sflag [#allocation23], %s1103
          %s1105 = sand.u32 %s327, 1
          %s1106 = smul.addr %s1105, 16
          %s1107 = scalar_lea.vmem [#allocation22], %s1106
          %1108 = dma.done %s1104, 256
        $region148: #{tpu_custom_call.1} parent=139 // pred_fallthru
          _
        // Predicated region
        $region149: #{tpu_custom_call.1} parent=139 // pred_check
          %p1109 = pneg %p370
        $region150: #{tpu_custom_call.1} parent=139 // pred_check_branch
          %1111 = sbr.rel (%p1109) target = $region152
        $region151: #{tpu_custom_call.1} parent=139 // pred_region
          %s1112 = sand.u32 %s45, 1
          %s1113 = scalar_lea.sflag [#allocation23], %s1112
          %s1114 = sand.u32 %s355, 1
          %s1115 = smul.addr %s1114, 16
          %s1116 = scalar_lea.vmem [#allocation24], %s1115
          %1117 = dma.done %s1113, 256
        $region152: #{tpu_custom_call.1} parent=139 // pred_fallthru
          _
      $region140: #{tpu_custom_call.1} parent=5 // pred_fallthru
        _
    $region6: #{tpu_custom_call.1} parent=1 // loop_footer
      %s43 = sadd.s32 1, %s39
    $region7: #{tpu_custom_call.1} parent=1 // loop_footer_branch
      %38 = sbr.rel target = $region3
    $region8: #{tpu_custom_call.1} parent=1 // loop_exit
      _
    %1118 = vsyncpa [#allocation6], 1
    %s1119 = scalar_lea.sflag [#allocation6], 1
    %1120 = vsyncpa %s1119, 1
    %1121 = vsyncpa [#allocation13], 1
    %1122 = vsyncpa [#allocation16], 1
    %s1123 = scalar_lea.sflag [#allocation16], 1
    %1124 = vsyncpa %s1123, 1
    %1125 = vsyncpa [#allocation19], 1
    %s1126 = scalar_lea.sflag [#allocation19], 1
    %1127 = vsyncpa %s1126, 1
    %1128 = vsyncpa [#allocation7], 1
    %s1129 = scalar_lea.sflag [#allocation7], 1
    %1130 = vsyncpa %s1129, 1
    %1131 = vsyncpa [#allocation23], 1
    %s1132 = scalar_lea.sflag [#allocation23], 1
    %1133 = vsyncpa %s1132, 1
    %1134 = vsyncpa [#allocation26], 1
    %1135 = vsyncpa [#allocation29], 1
    %1136 = vsyncpa [#allocation8], 1
    %s1137 = scalar_lea.sflag [#allocation8], 1
    %1138 = vsyncpa %s1137, 1
    %1139 = vsyncpa [#allocation9], 1
    %s1140 = scalar_lea.sflag [#allocation9], 1
    %1141 = vsyncpa %s1140, 1

</llo_original>
